<compile_context>
chip_gen: v7x
topology: tpu7x:2x2x1
jax: 0.10.0
libtpu: 0.0.40
codegen_flags: <defaults>
</compile_context>

<pallas_src>
import functools

import jax
import jax.numpy as jnp
from jax.experimental import pallas as pl
from jax.experimental.pallas import tpu as pltpu

# ---------------- model config (small, lane-dense) ----------------
D_MODEL = 128          # d_model  (last-dim multiple of 128 -> lane-dense)
D_FFN = 256            # d_ffn
LN_EPS = 1e-5          # torch.nn.LayerNorm default


# =============================== kernel =====================================

def _ffn_kernel(x_ref, w1_ref, b1_ref, w2_ref, b2_ref, g_ref, be_ref, out_ref):
    """Fused linear1 -> relu -> linear2 -> residual -> LayerNorm on a row tile.

    x_ref   : (TM, C)      f32 input rows
    w1_ref  : (C, D_FFN)   bf16 linear1 weight (row-major, x @ w1)
    b1_ref  : (1, D_FFN)   f32
    w2_ref  : (D_FFN, C)   bf16 linear2 weight
    b2_ref  : (1, C)       f32
    g_ref   : (1, C)       f32 norm3 gamma
    be_ref  : (1, C)       f32 norm3 beta
    out_ref : (TM, C)      f32
    """
    x = x_ref[...]                                                  # f32 rows

    # linear1 + relu            (dropout3 == identity)
    t = jnp.dot(x.astype(jnp.bfloat16), w1_ref[...],
                preferred_element_type=jnp.float32) + b1_ref[...]
    t = jnp.maximum(t, 0.0)

    # linear2 + residual        (dropout4 == identity)
    t = jnp.dot(t.astype(jnp.bfloat16), w2_ref[...],
                preferred_element_type=jnp.float32) + b2_ref[...]
    y = x + t

    # norm3 (LayerNorm over the channel dim) — all f32
    mu = jnp.mean(y, axis=-1, keepdims=True)
    d = y - mu
    var = jnp.mean(d * d, axis=-1, keepdims=True)
    out_ref[...] = (d * jax.lax.rsqrt(var + LN_EPS) * g_ref[...]
                    + be_ref[...]).astype(out_ref.dtype)


# =============================== wrapper ====================================

def _choose_tm(n_rows, desired=1024, min_steps=4):
    """Pick a row-tile: big (>=512 preferred) but keep >= min_steps grid steps
    so both v7x TensorCores get work; multiple of 8 for sublane alignment."""
    cap = max(8, n_rows // min_steps)
    tm = max(8, min(desired, cap))
    return (tm // 8) * 8


def ffn_forward(params, tgt, *, tm=None):
    """tgt: (B, L, C) float32  ->  (B, L, C) float32."""
    B, L, C = tgt.shape
    assert C == D_MODEL
    R = B * L
    if tm is None:
        tm = _choose_tm(R)

    x = tgt.reshape(R, C)                          # collapse batch*seq -> rows

    # Pad rows to a tile multiple (padded rows are garbage, sliced off below).
    n_tiles = pl.cdiv(R, tm)
    R_pad = n_tiles * tm
    if R_pad != R:
        x = jnp.pad(x, ((0, R_pad - R), (0, 0)))

    # bf16 MXU operands (f32 accumulation inside the kernel).
    w1 = params["w1"].astype(jnp.bfloat16)
    w2 = params["w2"].astype(jnp.bfloat16)

    # Constant (grid-invariant) blocks: single-buffered, no dead rotation.
    const = lambda shape: pl.BlockSpec(shape, lambda i: (0, 0),
                                       pipeline_mode=pl.Buffered(1))

    # VMEM budget: double-buffered x + out tiles, single-buffered params,
    # plus compiler staging headroom.  Stays portable across v5e/v6e/v7x.
    vmem_bytes = min(32 * 1024 * 1024,
                     max(16 * 1024 * 1024, 8 * tm * C * 4))

    out = pl.pallas_call(
        _ffn_kernel,
        out_shape=jax.ShapeDtypeStruct((R_pad, C), jnp.float32),
        grid=(n_tiles,),
        in_specs=[
            pl.BlockSpec((tm, C), lambda i: (i, 0)),      # x row tile
            const(w1.shape), const(params["b1"].shape),
            const(w2.shape), const(params["b2"].shape),
            const(params["g3"].shape), const(params["be3"].shape),
        ],
        out_specs=pl.BlockSpec((tm, C), lambda i: (i, 0)),
        compiler_params=pltpu.CompilerParams(
            dimension_semantics=("parallel",),            # v7x: shard over 2 TCs
            vmem_limit_bytes=vmem_bytes),
    )(x, w1, params["b1"], w2, params["b2"], params["g3"], params["be3"])

    return out[:R].reshape(B, L, C)


# Pure-JAX reference (f32; kernel uses bf16 MXU operands -> loose tolerance).
def ffn_reference(params, tgt):
    t = jnp.maximum(tgt @ params["w1"] + params["b1"], 0.0)
    t = t @ params["w2"] + params["b2"]
    y = tgt + t
    mu = jnp.mean(y, axis=-1, keepdims=True)
    var = jnp.mean((y - mu) ** 2, axis=-1, keepdims=True)
    return (y - mu) * jax.lax.rsqrt(var + LN_EPS) * params["g3"] + params["be3"]


# ============================ parameter setup ================================

def make_params(key):
    f32 = jnp.float32
    k1, k2 = jax.random.split(key, 2)

    def xavier(k, fan_in, fan_out):
        lim = (6.0 / (fan_in + fan_out)) ** 0.5
        return jax.random.uniform(k, (fan_in, fan_out), f32, -lim, lim)

    return {
        # linear1 / linear2: xavier_uniform_ weights, zero bias (as in module)
        "w1": xavier(k1, D_MODEL, D_FFN),
        "b1": jnp.zeros((1, D_FFN), f32),
        "w2": xavier(k2, D_FFN, D_MODEL),
        "b2": jnp.zeros((1, D_MODEL), f32),
        # norm3: default LayerNorm affine params
        "g3": jnp.ones((1, D_MODEL), f32),
        "be3": jnp.zeros((1, D_MODEL), f32),
    }


# ================================== main =====================================

if __name__ == "__main__":
    key = jax.random.PRNGKey(0)
    kp, kx = jax.random.split(key, 2)

    B, L = 2, 1024                               # 2048 rows -> tm=512, 4 grid steps
    tgt = jax.random.normal(kx, (B, L, D_MODEL), jnp.float32)
    params = make_params(kp)

    fn = jax.jit(functools.partial(ffn_forward, params))
    out = jax.block_until_ready(fn(tgt))

    assert out.shape == (B, L, D_MODEL), out.shape
    assert bool(jnp.all(jnp.isfinite(out)))

    ref = ffn_reference(params, tgt)
    # bf16 MXU operands vs f32 reference -> ~1e-2 scale differences expected.
    assert bool(jnp.allclose(out, ref, atol=2e-2, rtol=2e-2)), "mismatch vs reference"

    print("KERNEL_OK")
</pallas_src>

<mosaic_0001>
module attributes {stable_mosaic.version = 11 : i64} {
  func.func @_ffn_kernel(%arg0: i32, %arg1: memref<512x128xf32, #tpu.memory_space<vmem>>, %arg2: memref<128x256xbf16, #tpu.memory_space<vmem>>, %arg3: memref<1x256xf32, #tpu.memory_space<vmem>>, %arg4: memref<256x128xbf16, #tpu.memory_space<vmem>>, %arg5: memref<1x128xf32, #tpu.memory_space<vmem>>, %arg6: memref<1x128xf32, #tpu.memory_space<vmem>>, %arg7: memref<1x128xf32, #tpu.memory_space<vmem>>, %arg8: memref<512x128xf32, #tpu.memory_space<vmem>>) attributes {dimension_semantics = [#tpu.dimension_semantics<parallel>], iteration_bounds = array<i64: 4>, scalar_prefetch = 0 : i64, scratch_operands = 0 : i64, tpu.core_type = #tpu.core_type<tc>, window_params = [{transform_indices = @transform_0, window_bounds = array<i64: 512, 128>}, {pipeline_mode = #tpu.pipeline_mode<synchronous>, transform_indices = @transform_1, window_bounds = array<i64: 128, 256>}, {pipeline_mode = #tpu.pipeline_mode<synchronous>, transform_indices = @transform_2, window_bounds = array<i64: 1, 256>}, {pipeline_mode = #tpu.pipeline_mode<synchronous>, transform_indices = @transform_3, window_bounds = array<i64: 256, 128>}, {pipeline_mode = #tpu.pipeline_mode<synchronous>, transform_indices = @transform_4, window_bounds = array<i64: 1, 128>}, {pipeline_mode = #tpu.pipeline_mode<synchronous>, transform_indices = @transform_5, window_bounds = array<i64: 1, 128>}, {pipeline_mode = #tpu.pipeline_mode<synchronous>, transform_indices = @transform_6, window_bounds = array<i64: 1, 128>}, {transform_indices = @transform_7, window_bounds = array<i64: 512, 128>}]} {
    %c0 = arith.constant 0 : index
    %c0_0 = arith.constant 0 : index
    %0 = vector.load %arg1[%c0, %c0_0] : memref<512x128xf32, #tpu.memory_space<vmem>>, vector<512x128xf32>
    %1 = arith.truncf %0 : vector<512x128xf32> to vector<512x128xbf16>
    %c0_1 = arith.constant 0 : index
    %c0_2 = arith.constant 0 : index
    %2 = vector.load %arg2[%c0_1, %c0_2] : memref<128x256xbf16, #tpu.memory_space<vmem>>, vector<128x256xbf16>
    %cst = arith.constant dense<0.000000e+00> : vector<512x256xf32>
    %3 = tpu.matmul %1, %2, %cst {dimension_numbers = #tpu.dot_dimension_numbers<[1], [0], [0], [1], [0, 0, 1, 1], [], []>} : vector<512x128xbf16>, vector<128x256xbf16>, vector<512x256xf32> -> vector<512x256xf32>
    %c0_3 = arith.constant 0 : index
    %c0_4 = arith.constant 0 : index
    %4 = vector.load %arg3[%c0_3, %c0_4] : memref<1x256xf32, #tpu.memory_space<vmem>>, vector<1x256xf32>
    %5 = vector.broadcast %4 : vector<1x256xf32> to vector<512x256xf32>
    %6 = arith.addf %3, %5 : vector<512x256xf32>
    %cst_5 = arith.constant 0.000000e+00 : f32
    %7 = vector.broadcast %cst_5 : f32 to vector<512x256xf32>
    %8 = arith.maximumf %6, %7 : vector<512x256xf32>
    %9 = arith.truncf %8 : vector<512x256xf32> to vector<512x256xbf16>
    %c0_6 = arith.constant 0 : index
    %c0_7 = arith.constant 0 : index
    %10 = vector.load %arg4[%c0_6, %c0_7] : memref<256x128xbf16, #tpu.memory_space<vmem>>, vector<256x128xbf16>
    %cst_8 = arith.constant dense<0.000000e+00> : vector<512x128xf32>
    %11 = tpu.matmul %9, %10, %cst_8 {dimension_numbers = #tpu.dot_dimension_numbers<[1], [0], [0], [1], [0, 0, 1, 1], [], []>} : vector<512x256xbf16>, vector<256x128xbf16>, vector<512x128xf32> -> vector<512x128xf32>
    %c0_9 = arith.constant 0 : index
    %c0_10 = arith.constant 0 : index
    %12 = vector.load %arg5[%c0_9, %c0_10] : memref<1x128xf32, #tpu.memory_space<vmem>>, vector<1x128xf32>
    %13 = vector.broadcast %12 : vector<1x128xf32> to vector<512x128xf32>
    %14 = arith.addf %11, %13 : vector<512x128xf32>
    %15 = arith.addf %0, %14 : vector<512x128xf32>
    %cst_11 = arith.constant dense<0.000000e+00> : vector<512xf32>
    %16 = vector.multi_reduction <add>, %15, %cst_11 [1] : vector<512x128xf32> to vector<512xf32>
    %17 = vector.shape_cast %16 : vector<512xf32> to vector<512x1xf32>
    %cst_12 = arith.constant 1.280000e+02 : f32
    %18 = vector.broadcast %cst_12 : f32 to vector<512x1xf32>
    %19 = arith.divf %17, %18 : vector<512x1xf32>
    %20 = vector.broadcast %19 : vector<512x1xf32> to vector<512x128xf32>
    %21 = arith.subf %15, %20 : vector<512x128xf32>
    %22 = arith.mulf %21, %21 : vector<512x128xf32>
    %cst_13 = arith.constant dense<0.000000e+00> : vector<512xf32>
    %23 = vector.multi_reduction <add>, %22, %cst_13 [1] : vector<512x128xf32> to vector<512xf32>
    %24 = vector.shape_cast %23 : vector<512xf32> to vector<512x1xf32>
    %cst_14 = arith.constant 1.280000e+02 : f32
    %25 = vector.broadcast %cst_14 : f32 to vector<512x1xf32>
    %26 = arith.divf %24, %25 : vector<512x1xf32>
    %cst_15 = arith.constant 9.99999974E-6 : f32
    %27 = vector.broadcast %cst_15 : f32 to vector<512x1xf32>
    %28 = arith.addf %26, %27 : vector<512x1xf32>
    %29 = math.rsqrt %28 : vector<512x1xf32>
    %30 = vector.broadcast %29 : vector<512x1xf32> to vector<512x128xf32>
    %31 = arith.mulf %21, %30 : vector<512x128xf32>
    %c0_16 = arith.constant 0 : index
    %c0_17 = arith.constant 0 : index
    %32 = vector.load %arg6[%c0_16, %c0_17] : memref<1x128xf32, #tpu.memory_space<vmem>>, vector<1x128xf32>
    %33 = vector.broadcast %32 : vector<1x128xf32> to vector<512x128xf32>
    %34 = arith.mulf %31, %33 : vector<512x128xf32>
    %c0_18 = arith.constant 0 : index
    %c0_19 = arith.constant 0 : index
    %35 = vector.load %arg7[%c0_18, %c0_19] : memref<1x128xf32, #tpu.memory_space<vmem>>, vector<1x128xf32>
    %36 = vector.broadcast %35 : vector<1x128xf32> to vector<512x128xf32>
    %37 = arith.addf %34, %36 : vector<512x128xf32>
    %c0_20 = arith.constant 0 : index
    %c0_21 = arith.constant 0 : index
    %38 = vector.load %arg8[%c0_20, %c0_21] : memref<512x128xf32, #tpu.memory_space<vmem>>, vector<512x128xf32>
    tpu.vector_store %arg8[%c0_20, %c0_21], %37 {strides = array<i32>} : memref<512x128xf32, #tpu.memory_space<vmem>>, vector<512x128xf32>,
    return
  }
  func.func @transform_0(%arg0: i32) -> (i32, i32) {
    %c0_i32 = arith.constant 0 : i32
    %c0_i32_0 = arith.constant 0 : i32
    return %arg0, %c0_i32 : i32, i32
  }
  func.func @transform_1(%arg0: i32) -> (i32, i32) {
    %c0_i32 = arith.constant 0 : i32
    %c0_i32_0 = arith.constant 0 : i32
    %c0_i32_1 = arith.constant 0 : i32
    return %c0_i32, %c0_i32_0 : i32, i32
  }
  func.func @transform_2(%arg0: i32) -> (i32, i32) {
    %c0_i32 = arith.constant 0 : i32
    %c0_i32_0 = arith.constant 0 : i32
    %c0_i32_1 = arith.constant 0 : i32
    return %c0_i32, %c0_i32_0 : i32, i32
  }
  func.func @transform_3(%arg0: i32) -> (i32, i32) {
    %c0_i32 = arith.constant 0 : i32
    %c0_i32_0 = arith.constant 0 : i32
    %c0_i32_1 = arith.constant 0 : i32
    return %c0_i32, %c0_i32_0 : i32, i32
  }
  func.func @transform_4(%arg0: i32) -> (i32, i32) {
    %c0_i32 = arith.constant 0 : i32
    %c0_i32_0 = arith.constant 0 : i32
    %c0_i32_1 = arith.constant 0 : i32
    return %c0_i32, %c0_i32_0 : i32, i32
  }
  func.func @transform_5(%arg0: i32) -> (i32, i32) {
    %c0_i32 = arith.constant 0 : i32
    %c0_i32_0 = arith.constant 0 : i32
    %c0_i32_1 = arith.constant 0 : i32
    return %c0_i32, %c0_i32_0 : i32, i32
  }
  func.func @transform_6(%arg0: i32) -> (i32, i32) {
    %c0_i32 = arith.constant 0 : i32
    %c0_i32_0 = arith.constant 0 : i32
    %c0_i32_1 = arith.constant 0 : i32
    return %c0_i32, %c0_i32_0 : i32, i32
  }
  func.func @transform_7(%arg0: i32) -> (i32, i32) {
    %c0_i32 = arith.constant 0 : i32
    %c0_i32_0 = arith.constant 0 : i32
    return %arg0, %c0_i32 : i32, i32
  }
}

</mosaic_0001>

<llo_original>
// kernel: ffn_forward.1
$region0: #{ffn_forward.1}
  #allocation0 [shape = 'u32[]', space=smem, size = 0x4, offset = 0x4, fixed_abs, tag = 'smem constant byte address 0x4 - core index']
  #allocation1 [shape = 'u32[144,128]{1,0:T(1,128)}', space=vmem, size = 0x12000, scoped, tag = 'internal scratch']
  %s0 = inlined_call_operand.hbm [shape: f32[2048,128], index: 0, kind: input, shape index: {}]
  %s1 = inlined_call_operand.vmem [shape: bf16[128,256], index: 1, kind: input, shape index: {}]
  %s2 = inlined_call_operand.vmem [shape: f32[1,256], index: 2, kind: input, shape index: {}]
  %s3 = inlined_call_operand.vmem [shape: bf16[256,128], index: 3, kind: input, shape index: {}]
  %s4 = inlined_call_operand.vmem [shape: f32[1,128], index: 4, kind: input, shape index: {}, may-alias: {4,6}]
  %s5 = inlined_call_operand.vmem [shape: f32[1,128], index: 5, kind: input, shape index: {}]
  %s6 = inlined_call_operand.vmem [shape: f32[1,128], index: 6, kind: input, shape index: {}, may-alias: {4,6}]
  %s7 = inlined_call_operand.hbm [shape: f32[2048,128], index: 7, kind: output, shape index: {}]
  %s8 = sld [smem:[#allocation0]]
  $region65: #{ffn_forward.1} parent=0
    _
  %s10 = ssub.s32 1, %s8
  %s11 = scalar_select 0, %s10, %s8
  $region1: #{ffn_forward.1} parent=0
    #allocation2 [shape = 'u8[524288]{0}', space=vmem, size = 0x80000, scoped, tag = 'input window, operand 0']
    #allocation3 [shape = 's32[2]{0}', space=sflag, size = 0x8, scoped, tag = 'scoped memory for ffn_forward.1']
    #allocation4 [shape = 's32[2]{0}', space=sflag, size = 0x8, scoped, tag = 'scoped memory for ffn_forward.1']
    #allocation5 [shape = 'u8[524288]{0}', space=vmem, size = 0x80000, scoped, tag = 'output window, operand 0']
    %12 = vsyncpa [#allocation3], 0
    %s13 = scalar_lea.sflag [#allocation3], 1
    %14 = vsyncpa %s13, 0
    %15 = vsyncpa [#allocation4], 0
    %s16 = scalar_lea.sflag [#allocation4], 1
    %17 = vsyncpa %s16, 0
    loop: start=0, step=1, limit=6
    $region2: #{ffn_forward.1} parent=1 // loop_pre_header
      _
    $region3: #{ffn_forward.1} parent=1 // loop_header
      %s19 = sphi 0, %s23
      %p20 = scmp.ge.s32.totalorder %s19, 6
      %s29 = sphi 0, %s31
      %s32 = sphi 0, %s29
      %s33 = sphi 0, %s32
      %s49 = sphi 0, %s33
      %s53 = sphi 0, %s53
      %s55 = sphi 0, %s53
      %s56 = sphi 0, %s55
      %s70 = sphi 0, %s56
      %s74 = sphi 0, %s74
      %s76 = sphi 0, %s74
      %s77 = sphi 0, %s76
      %s91 = sphi 0, %s77
      %s95 = sphi 0, %s95
      %s97 = sphi 0, %s95
      %s98 = sphi 0, %s97
      %s112 = sphi 0, %s98
      %s116 = sphi 0, %s116
      %s118 = sphi 0, %s116
      %s119 = sphi 0, %s118
      %s133 = sphi 0, %s119
      %s137 = sphi 0, %s137
      %s139 = sphi 0, %s137
      %s140 = sphi 0, %s139
      %s154 = sphi 0, %s140
      %s158 = sphi 0, %s158
      %s160 = sphi 0, %s158
      %s161 = sphi 0, %s160
      %s175 = sphi 0, %s161
      %s181 = sphi 0, %s183
      %s184 = sphi 0, %s181
      %s185 = sphi 0, %s184
      %s201 = sphi 0, %s185
    $region4: #{ffn_forward.1} parent=1 // loop_header_branch
      %22 = sbr.rel (%p20) target = $region8
    $region5: #{ffn_forward.1} parent=1 // loop_body
      %s24 = ssub.s32 %s19, 1
      %s25 = ssub.s32 %s19, 2
      %s26 = sadd.s32 %s19, 1
      %s27 = ssub.s32 %s19, %s26
      %p28 = scmp.eq.s32.totalorder %s27, 0
      %s30 = sadd.s32 %s29, 1
      %s31 = scalar_select %p28, %s29, %s30
      %p34 = pneg %p28
      %p35 = scmp.eq.s32.totalorder %s19, 3
      %p36 = por %p34, %p35
      %p37 = scmp.ne.s32.totalorder %s29, %s32
      %p38 = scmp.eq.s32.totalorder %s19, 0
      %p39 = por %p37, %p38
      %p40 = scmp.ne.s32.totalorder %s29, %s32
      %p41 = scmp.eq.s32.totalorder %s24, 3
      %p42 = por %p40, %p41
      %p43 = scmp.ne.s32.totalorder %s32, %s33
      %p44 = scmp.eq.s32.totalorder %s24, 0
      %p45 = por %p43, %p44
      %p46 = scmp.ne.s32.totalorder %s32, %s33
      %p47 = scmp.eq.s32.totalorder %s25, 3
      %p48 = por %p46, %p47
      %p50 = scmp.ne.s32.totalorder %s33, %s49
      %p51 = scmp.eq.s32.totalorder %s25, 0
      %p52 = por %p50, %p51
      %s54 = sadd.s32 %s53, 1
      %p57 = scmp.eq.s32.totalorder %s19, 3
      %p58 = scmp.ne.s32.totalorder %s53, %s55
      %p59 = scmp.eq.s32.totalorder %s19, 0
      %p60 = por %p58, %p59
      %p61 = scmp.ne.s32.totalorder %s53, %s55
      %p62 = scmp.eq.s32.totalorder %s24, 3
      %p63 = por %p61, %p62
      %p64 = scmp.ne.s32.totalorder %s55, %s56
      %p65 = scmp.eq.s32.totalorder %s24, 0
      %p66 = por %p64, %p65
      %p67 = scmp.ne.s32.totalorder %s55, %s56
      %p68 = scmp.eq.s32.totalorder %s25, 3
      %p69 = por %p67, %p68
      %p71 = scmp.ne.s32.totalorder %s56, %s70
      %p72 = scmp.eq.s32.totalorder %s25, 0
      %p73 = por %p71, %p72
      %s75 = sadd.s32 %s74, 1
      %p78 = scmp.eq.s32.totalorder %s19, 3
      %p79 = scmp.ne.s32.totalorder %s74, %s76
      %p80 = scmp.eq.s32.totalorder %s19, 0
      %p81 = por %p79, %p80
      %p82 = scmp.ne.s32.totalorder %s74, %s76
      %p83 = scmp.eq.s32.totalorder %s24, 3
      %p84 = por %p82, %p83
      %p85 = scmp.ne.s32.totalorder %s76, %s77
      %p86 = scmp.eq.s32.totalorder %s24, 0
      %p87 = por %p85, %p86
      %p88 = scmp.ne.s32.totalorder %s76, %s77
      %p89 = scmp.eq.s32.totalorder %s25, 3
      %p90 = por %p88, %p89
      %p92 = scmp.ne.s32.totalorder %s77, %s91
      %p93 = scmp.eq.s32.totalorder %s25, 0
      %p94 = por %p92, %p93
      %s96 = sadd.s32 %s95, 1
      %p99 = scmp.eq.s32.totalorder %s19, 3
      %p100 = scmp.ne.s32.totalorder %s95, %s97
      %p101 = scmp.eq.s32.totalorder %s19, 0
      %p102 = por %p100, %p101
      %p103 = scmp.ne.s32.totalorder %s95, %s97
      %p104 = scmp.eq.s32.totalorder %s24, 3
      %p105 = por %p103, %p104
      %p106 = scmp.ne.s32.totalorder %s97, %s98
      %p107 = scmp.eq.s32.totalorder %s24, 0
      %p108 = por %p106, %p107
      %p109 = scmp.ne.s32.totalorder %s97, %s98
      %p110 = scmp.eq.s32.totalorder %s25, 3
      %p111 = por %p109, %p110
      %p113 = scmp.ne.s32.totalorder %s98, %s112
      %p114 = scmp.eq.s32.totalorder %s25, 0
      %p115 = por %p113, %p114
      %s117 = sadd.s32 %s116, 1
      %p120 = scmp.eq.s32.totalorder %s19, 3
      %p121 = scmp.ne.s32.totalorder %s116, %s118
      %p122 = scmp.eq.s32.totalorder %s19, 0
      %p123 = por %p121, %p122
      %p124 = scmp.ne.s32.totalorder %s116, %s118
      %p125 = scmp.eq.s32.totalorder %s24, 3
      %p126 = por %p124, %p125
      %p127 = scmp.ne.s32.totalorder %s118, %s119
      %p128 = scmp.eq.s32.totalorder %s24, 0
      %p129 = por %p127, %p128
      %p130 = scmp.ne.s32.totalorder %s118, %s119
      %p131 = scmp.eq.s32.totalorder %s25, 3
      %p132 = por %p130, %p131
      %p134 = scmp.ne.s32.totalorder %s119, %s133
      %p135 = scmp.eq.s32.totalorder %s25, 0
      %p136 = por %p134, %p135
      %s138 = sadd.s32 %s137, 1
      %p141 = scmp.eq.s32.totalorder %s19, 3
      %p142 = scmp.ne.s32.totalorder %s137, %s139
      %p143 = scmp.eq.s32.totalorder %s19, 0
      %p144 = por %p142, %p143
      %p145 = scmp.ne.s32.totalorder %s137, %s139
      %p146 = scmp.eq.s32.totalorder %s24, 3
      %p147 = por %p145, %p146
      %p148 = scmp.ne.s32.totalorder %s139, %s140
      %p149 = scmp.eq.s32.totalorder %s24, 0
      %p150 = por %p148, %p149
      %p151 = scmp.ne.s32.totalorder %s139, %s140
      %p152 = scmp.eq.s32.totalorder %s25, 3
      %p153 = por %p151, %p152
      %p155 = scmp.ne.s32.totalorder %s140, %s154
      %p156 = scmp.eq.s32.totalorder %s25, 0
      %p157 = por %p155, %p156
      %s159 = sadd.s32 %s158, 1
      %p162 = scmp.eq.s32.totalorder %s19, 3
      %p163 = scmp.ne.s32.totalorder %s158, %s160
      %p164 = scmp.eq.s32.totalorder %s19, 0
      %p165 = por %p163, %p164
      %p166 = scmp.ne.s32.totalorder %s158, %s160
      %p167 = scmp.eq.s32.totalorder %s24, 3
      %p168 = por %p166, %p167
      %p169 = scmp.ne.s32.totalorder %s160, %s161
      %p170 = scmp.eq.s32.totalorder %s24, 0
      %p171 = por %p169, %p170
      %p172 = scmp.ne.s32.totalorder %s160, %s161
      %p173 = scmp.eq.s32.totalorder %s25, 3
      %p174 = por %p172, %p173
      %p176 = scmp.ne.s32.totalorder %s161, %s175
      %p177 = scmp.eq.s32.totalorder %s25, 0
      %p178 = por %p176, %p177
      %s179 = ssub.s32 %s19, %s26
      %p180 = scmp.eq.s32.totalorder %s179, 0
      %s182 = sadd.s32 %s181, 1
      %s183 = scalar_select %p180, %s181, %s182
      %p186 = pneg %p180
      %p187 = scmp.eq.s32.totalorder %s19, 3
      %p188 = por %p186, %p187
      %p189 = scmp.ne.s32.totalorder %s181, %s184
      %p190 = scmp.eq.s32.totalorder %s19, 0
      %p191 = por %p189, %p190
      %p192 = scmp.ne.s32.totalorder %s181, %s184
      %p193 = scmp.eq.s32.totalorder %s24, 3
      %p194 = por %p192, %p193
      %p195 = scmp.ne.s32.totalorder %s184, %s185
      %p196 = scmp.eq.s32.totalorder %s24, 0
      %p197 = por %p195, %p196
      %p198 = scmp.ne.s32.totalorder %s184, %s185
      %p199 = scmp.eq.s32.totalorder %s25, 3
      %p200 = por %p198, %p199
      %p202 = scmp.ne.s32.totalorder %s185, %s201
      %p203 = scmp.eq.s32.totalorder %s25, 0
      %p204 = por %p202, %p203
      %p205 = scmp.le.s32.totalorder 1, %s19
      %p206 = scmp.lt.s32.totalorder %s19, 5
      %p207 = pnand %p205, %p206
      %p208 = pneg %p207
      // Predicated region
      $region9: #{ffn_forward.1} parent=5 // pred_check
        _
      $region10: #{ffn_forward.1} parent=5 // pred_check_branch
        %210 = sbr.rel (%p207) target = $region12
      $region11: #{ffn_forward.1} parent=5 // pred_region
        %s211 = ssub.s32 %s19, 1
        // Predicated region
        $region13: #{ffn_forward.1} parent=11 // pred_check
          %p212 = pneg %p66
        $region14: #{ffn_forward.1} parent=11 // pred_check_branch
          %214 = sbr.rel (%p212) target = $region16
        $region15: #{ffn_forward.1} parent=11 // pred_region
          _
        $region16: #{ffn_forward.1} parent=11 // pred_fallthru
          _
        // Predicated region
        $region17: #{ffn_forward.1} parent=11 // pred_check
          %p215 = pneg %p87
        $region18: #{ffn_forward.1} parent=11 // pred_check_branch
          %217 = sbr.rel (%p215) target = $region20
        $region19: #{ffn_forward.1} parent=11 // pred_region
          _
        $region20: #{ffn_forward.1} parent=11 // pred_fallthru
          _
        // Predicated region
        $region21: #{ffn_forward.1} parent=11 // pred_check
          %p218 = pneg %p108
        $region22: #{ffn_forward.1} parent=11 // pred_check_branch
          %220 = sbr.rel (%p218) target = $region24
        $region23: #{ffn_forward.1} parent=11 // pred_region
          _
        $region24: #{ffn_forward.1} parent=11 // pred_fallthru
          _
        // Predicated region
        $region25: #{ffn_forward.1} parent=11 // pred_check
          %p221 = pneg %p129
        $region26: #{ffn_forward.1} parent=11 // pred_check_branch
          %223 = sbr.rel (%p221) target = $region28
        $region27: #{ffn_forward.1} parent=11 // pred_region
          _
        $region28: #{ffn_forward.1} parent=11 // pred_fallthru
          _
        // Predicated region
        $region29: #{ffn_forward.1} parent=11 // pred_check
          %p224 = pneg %p150
        $region30: #{ffn_forward.1} parent=11 // pred_check_branch
          %226 = sbr.rel (%p224) target = $region32
        $region31: #{ffn_forward.1} parent=11 // pred_region
          _
        $region32: #{ffn_forward.1} parent=11 // pred_fallthru
          _
        // Predicated region
        $region33: #{ffn_forward.1} parent=11 // pred_check
          %p227 = pneg %p171
        $region34: #{ffn_forward.1} parent=11 // pred_check_branch
          %229 = sbr.rel (%p227) target = $region36
        $region35: #{ffn_forward.1} parent=11 // pred_region
          _
        $region36: #{ffn_forward.1} parent=11 // pred_fallthru
          _
      $region12: #{ffn_forward.1} parent=5 // pred_fallthru
        _
      %p230 = scmp.lt.s32.totalorder %s19, 4
      // Predicated region
      $region37: #{ffn_forward.1} parent=5 // pred_check
        %p231 = pneg %p230
      $region38: #{ffn_forward.1} parent=5 // pred_check_branch
        %233 = sbr.rel (%p231) target = $region40
      $region39: #{ffn_forward.1} parent=5 // pred_region
        // Predicated region
        $region41: #{ffn_forward.1} parent=39 // pred_check
          %p234 = pneg %p39
        $region42: #{ffn_forward.1} parent=39 // pred_check_branch
          %236 = sbr.rel (%p234) target = $region44
        $region43: #{ffn_forward.1} parent=39 // pred_region
          %s237 = sand.u32 %s29, 1
          %s238 = scalar_lea.sflag [#allocation3], %s237
          %s239 = sand.u32 %s29, 1
          %s240 = smul.addr %s239, 512
          %s241 = scalar_lea.vmem [#allocation2], %s240
          %s242 = smul.u32 64, %s19
          %s244 = ssub.s32 8192, 8192
          %245 = vsyncadd %s238, %s244
          %s246 = smul.addr %s242, 128
          %s247 = scalar_lea.hbm %s0, %s246
          %s248 = sshll.u32 %s241, 4
          %s249 = int_to_ptr.vmem [resolvable:$true] %s248
          %254 = dma.hbm_to_vmem [thread:$0]  %s247, 8192, %s249, %s238, 128, 128, 8
        $region44: #{ffn_forward.1} parent=39 // pred_fallthru
          _
      $region40: #{ffn_forward.1} parent=5 // pred_fallthru
        _
      %p255 = scmp.le.s32.totalorder 1, %s19
      %p256 = scmp.lt.s32.totalorder %s19, 5
      %p257 = pnand %p255, %p256
      %p258 = pneg %p257
      // Predicated region
      $region45: #{ffn_forward.1} parent=5 // pred_check
        _
      $region46: #{ffn_forward.1} parent=5 // pred_check_branch
        %260 = sbr.rel (%p257) target = $region48
      $region47: #{ffn_forward.1} parent=5 // pred_region
        %s261 = ssub.s32 %s19, 1
        %s262 = sand.u32 %s32, 1
        %s263 = scalar_lea.sflag [#allocation3], %s262
        %s264 = sand.u32 %s32, 1
        %s265 = smul.addr %s264, 512
        %s266 = scalar_lea.vmem [#allocation2], %s265
        // Predicated region
        $region49: #{ffn_forward.1} parent=47 // pred_check
          %p267 = pneg %p45
        $region50: #{ffn_forward.1} parent=47 // pred_check_branch
          %269 = sbr.rel (%p267) target = $region52
        $region51: #{ffn_forward.1} parent=47 // pred_region
          %270 = dma.done %s263, 8192
        $region52: #{ffn_forward.1} parent=47 // pred_fallthru
          _
        %s271 = sand.u32 %s32, 1
        %s272 = scalar_lea.sflag [#allocation3], %s271
        %s273 = sand.u32 %s32, 1
        %s274 = smul.addr %s273, 512
        %s275 = scalar_lea.vmem [#allocation2], %s274
        %p276 = pneg %p45
        %p277 = pneg %p42
        %p278 = pneg %p66
        %p279 = pneg %p63
        %p280 = pneg %p87
        %p281 = pneg %p84
        %p282 = pneg %p108
        %p283 = pneg %p105
        %p284 = pneg %p129
        %p285 = pneg %p126
        %p286 = pneg %p150
        %p287 = pneg %p147
        %p288 = pneg %p171
        %p289 = pneg %p168
        %p290 = pneg %p197
        %p291 = pneg %p194
        %s292 = sand.u32 %s184, 1
        %s293 = scalar_lea.sflag [#allocation4], %s292
        %s294 = sand.u32 %s184, 1
        %s295 = smul.addr %s294, 512
        %s296 = scalar_lea.vmem [#allocation5], %s295
        %s297 = smul.u32 64, %s24
        %s298 = smul.u32 64, %s24
        %v300 = vld [vmem:[%s266] sm:$0xff]
        %v301 = vld [vmem:[%s266 + $0x8] sm:$0xff]
        %v302 = vld [vmem:[%s266 + $0x10] sm:$0xff]
        %v303 = vld [vmem:[%s266 + $0x18] sm:$0xff]
        %v304 = vld [vmem:[%s266 + $0x20] sm:$0xff]
        %v305 = vld [vmem:[%s266 + $0x28] sm:$0xff]
        %v306 = vld [vmem:[%s266 + $0x30] sm:$0xff]
        %v307 = vld [vmem:[%s266 + $0x38] sm:$0xff]
        %v308 = vld [vmem:[%s266 + $0x40] sm:$0xff]
        %v309 = vld [vmem:[%s266 + $0x48] sm:$0xff]
        %v310 = vld [vmem:[%s266 + $0x50] sm:$0xff]
        %v311 = vld [vmem:[%s266 + $0x58] sm:$0xff]
        %v312 = vld [vmem:[%s266 + $0x60] sm:$0xff]
        %v313 = vld [vmem:[%s266 + $0x68] sm:$0xff]
        %v314 = vld [vmem:[%s266 + $0x70] sm:$0xff]
        %v315 = vld [vmem:[%s266 + $0x78] sm:$0xff]
        %v316 = vld [vmem:[%s266 + $0x80] sm:$0xff]
        %v317 = vld [vmem:[%s266 + $0x88] sm:$0xff]
        %v318 = vld [vmem:[%s266 + $0x90] sm:$0xff]
        %v319 = vld [vmem:[%s266 + $0x98] sm:$0xff]
        %v320 = vld [vmem:[%s266 + $0xa0] sm:$0xff]
        %v321 = vld [vmem:[%s266 + $0xa8] sm:$0xff]
        %v322 = vld [vmem:[%s266 + $0xb0] sm:$0xff]
        %v323 = vld [vmem:[%s266 + $0xb8] sm:$0xff]
        %v324 = vld [vmem:[%s266 + $0xc0] sm:$0xff]
        %v325 = vld [vmem:[%s266 + $0xc8] sm:$0xff]
        %v326 = vld [vmem:[%s266 + $0xd0] sm:$0xff]
        %v327 = vld [vmem:[%s266 + $0xd8] sm:$0xff]
        %v328 = vld [vmem:[%s266 + $0xe0] sm:$0xff]
        %v329 = vld [vmem:[%s266 + $0xe8] sm:$0xff]
        %v330 = vld [vmem:[%s266 + $0xf0] sm:$0xff]
        %v331 = vld [vmem:[%s266 + $0xf8] sm:$0xff]
        %v332 = vld [vmem:[%s266 + $0x100] sm:$0xff]
        %v333 = vld [vmem:[%s266 + $0x108] sm:$0xff]
        %v334 = vld [vmem:[%s266 + $0x110] sm:$0xff]
        %v335 = vld [vmem:[%s266 + $0x118] sm:$0xff]
        %v336 = vld [vmem:[%s266 + $0x120] sm:$0xff]
        %v337 = vld [vmem:[%s266 + $0x128] sm:$0xff]
        %v338 = vld [vmem:[%s266 + $0x130] sm:$0xff]
        %v339 = vld [vmem:[%s266 + $0x138] sm:$0xff]
        %v340 = vld [vmem:[%s266 + $0x140] sm:$0xff]
        %v341 = vld [vmem:[%s266 + $0x148] sm:$0xff]
        %v342 = vld [vmem:[%s266 + $0x150] sm:$0xff]
        %v343 = vld [vmem:[%s266 + $0x158] sm:$0xff]
        %v344 = vld [vmem:[%s266 + $0x160] sm:$0xff]
        %v345 = vld [vmem:[%s266 + $0x168] sm:$0xff]
        %v346 = vld [vmem:[%s266 + $0x170] sm:$0xff]
        %v347 = vld [vmem:[%s266 + $0x178] sm:$0xff]
        %v348 = vld [vmem:[%s266 + $0x180] sm:$0xff]
        %v349 = vld [vmem:[%s266 + $0x188] sm:$0xff]
        %v350 = vld [vmem:[%s266 + $0x190] sm:$0xff]
        %v351 = vld [vmem:[%s266 + $0x198] sm:$0xff]
        %v352 = vld [vmem:[%s266 + $0x1a0] sm:$0xff]
        %v353 = vld [vmem:[%s266 + $0x1a8] sm:$0xff]
        %v354 = vld [vmem:[%s266 + $0x1b0] sm:$0xff]
        %v355 = vld [vmem:[%s266 + $0x1b8] sm:$0xff]
        %v356 = vld [vmem:[%s266 + $0x1c0] sm:$0xff]
        %v357 = vld [vmem:[%s266 + $0x1c8] sm:$0xff]
        %v358 = vld [vmem:[%s266 + $0x1d0] sm:$0xff]
        %v359 = vld [vmem:[%s266 + $0x1d8] sm:$0xff]
        %v360 = vld [vmem:[%s266 + $0x1e0] sm:$0xff]
        %v361 = vld [vmem:[%s266 + $0x1e8] sm:$0xff]
        %v362 = vld [vmem:[%s266 + $0x1f0] sm:$0xff]
        %v363 = vld [vmem:[%s266 + $0x1f8] sm:$0xff]
        %v364 = vpack.c.bf16 %v301, %v300
        %v365 = vpack.c.bf16 %v303, %v302
        %v366 = vpack.c.bf16 %v305, %v304
        %v367 = vpack.c.bf16 %v307, %v306
        %v368 = vpack.c.bf16 %v309, %v308
        %v369 = vpack.c.bf16 %v311, %v310
        %v370 = vpack.c.bf16 %v313, %v312
        %v371 = vpack.c.bf16 %v315, %v314
        %v372 = vpack.c.bf16 %v317, %v316
        %v373 = vpack.c.bf16 %v319, %v318
        %v374 = vpack.c.bf16 %v321, %v320
        %v375 = vpack.c.bf16 %v323, %v322
        %v376 = vpack.c.bf16 %v325, %v324
        %v377 = vpack.c.bf16 %v327, %v326
        %v378 = vpack.c.bf16 %v329, %v328
        %v379 = vpack.c.bf16 %v331, %v330
        %v380 = vpack.c.bf16 %v333, %v332
        %v381 = vpack.c.bf16 %v335, %v334
        %v382 = vpack.c.bf16 %v337, %v336
        %v383 = vpack.c.bf16 %v339, %v338
        %v384 = vpack.c.bf16 %v341, %v340
        %v385 = vpack.c.bf16 %v343, %v342
        %v386 = vpack.c.bf16 %v345, %v344
        %v387 = vpack.c.bf16 %v347, %v346
        %v388 = vpack.c.bf16 %v349, %v348
        %v389 = vpack.c.bf16 %v351, %v350
        %v390 = vpack.c.bf16 %v353, %v352
        %v391 = vpack.c.bf16 %v355, %v354
        %v392 = vpack.c.bf16 %v357, %v356
        %v393 = vpack.c.bf16 %v359, %v358
        %v394 = vpack.c.bf16 %v361, %v360
        %v395 = vpack.c.bf16 %v363, %v362
        %v396 = vld [vmem:[%s1] sm:$0xff]
        %v397 = vld [vmem:[%s1 + $0x8] sm:$0xff]
        %v398 = vld [vmem:[%s1 + $0x10] sm:$0xff]
        %v399 = vld [vmem:[%s1 + $0x18] sm:$0xff]
        %v400 = vld [vmem:[%s1 + $0x20] sm:$0xff]
        %v401 = vld [vmem:[%s1 + $0x28] sm:$0xff]
        %v402 = vld [vmem:[%s1 + $0x30] sm:$0xff]
        %v403 = vld [vmem:[%s1 + $0x38] sm:$0xff]
        %v404 = vld [vmem:[%s1 + $0x40] sm:$0xff]
        %v405 = vld [vmem:[%s1 + $0x48] sm:$0xff]
        %v406 = vld [vmem:[%s1 + $0x50] sm:$0xff]
        %v407 = vld [vmem:[%s1 + $0x58] sm:$0xff]
        %v408 = vld [vmem:[%s1 + $0x60] sm:$0xff]
        %v409 = vld [vmem:[%s1 + $0x68] sm:$0xff]
        %v410 = vld [vmem:[%s1 + $0x70] sm:$0xff]
        %v411 = vld [vmem:[%s1 + $0x78] sm:$0xff]
        %v412 = vld [vmem:[%s2] sm:$0x3]
        %v414 = vlaneseq
        %v415 = vshrl.u32 %v414, 7
        %v416 = vsub.s32 0, %v415
        %v417 = vrot.slane %v412, %v416
        %v418 = vlaneseq
        %v419 = vshrl.u32 %v418, 7
        %v420 = vsub.s32 1, %v419
        %v421 = vrot.slane %v412, %v420
        %v440 = vunpack.c.l.b16 %v396
        %v441 = vunpack.c.h.b16 %v396
        %v442 = vunpack.c.l.b16 %v397
        %v443 = vunpack.c.h.b16 %v397
        %v444 = vunpack.c.l.b16 %v398
        %v445 = vunpack.c.h.b16 %v398
        %v446 = vunpack.c.l.b16 %v399
        %v447 = vunpack.c.h.b16 %v399
        %v448 = vunpack.c.l.b16 %v400
        %v449 = vunpack.c.h.b16 %v400
        %v450 = vunpack.c.l.b16 %v401
        %v451 = vunpack.c.h.b16 %v401
        %v452 = vunpack.c.l.b16 %v402
        %v453 = vunpack.c.h.b16 %v402
        %v454 = vunpack.c.l.b16 %v403
        %v455 = vunpack.c.h.b16 %v403
        %v456 = vunpack.c.l.b16 %v404
        %v457 = vunpack.c.h.b16 %v404
        %v458 = vunpack.c.l.b16 %v405
        %v459 = vunpack.c.h.b16 %v405
        %v460 = vunpack.c.l.b16 %v406
        %v461 = vunpack.c.h.b16 %v406
        %v462 = vunpack.c.l.b16 %v407
        %v463 = vunpack.c.h.b16 %v407
        %v464 = vunpack.c.l.b16 %v408
        %v465 = vunpack.c.h.b16 %v408
        %v466 = vunpack.c.l.b16 %v409
        %v467 = vunpack.c.h.b16 %v409
        %v468 = vunpack.c.l.b16 %v410
        %v469 = vunpack.c.h.b16 %v410
        %v470 = vunpack.c.l.b16 %v411
        %v471 = vunpack.c.h.b16 %v411
        %v472 = vpack.c.b16 %v442, %v440
        %v473 = vpack.c.b16 %v443, %v441
        %v474 = vpack.c.b16 %v446, %v444
        %v475 = vpack.c.b16 %v447, %v445
        %v476 = vpack.c.b16 %v450, %v448
        %v477 = vpack.c.b16 %v451, %v449
        %v478 = vpack.c.b16 %v454, %v452
        %v479 = vpack.c.b16 %v455, %v453
        %v480 = vpack.c.b16 %v458, %v456
        %v481 = vpack.c.b16 %v459, %v457
        %v482 = vpack.c.b16 %v462, %v460
        %v483 = vpack.c.b16 %v463, %v461
        %v484 = vpack.c.b16 %v466, %v464
        %v485 = vpack.c.b16 %v467, %v465
        %v486 = vpack.c.b16 %v470, %v468
        %v487 = vpack.c.b16 %v471, %v469
        %504 = vmatprep.subr.bf16.mxu0 %v473
        %505 = vmatpush1.bf16.msra.mxu0 %v472
        %506 = vmatprep.subr.bf16.mxu0 %v475
        %507 = vmatpush1.bf16.msra.mxu0 %v474
        %508 = vmatprep.subr.bf16.mxu0 %v477
        %509 = vmatpush1.bf16.msra.mxu0 %v476
        %510 = vmatprep.subr.bf16.mxu0 %v479
        %511 = vmatpush1.bf16.msra.mxu0 %v478
        %512 = vmatprep.subr.bf16.mxu0 %v481
        %513 = vmatpush1.bf16.msra.mxu0 %v480
        %514 = vmatprep.subr.bf16.mxu0 %v483
        %515 = vmatpush1.bf16.msra.mxu0 %v482
        %516 = vmatprep.subr.bf16.mxu0 %v485
        %517 = vmatpush1.bf16.msra.mxu0 %v484
        %518 = vmatprep.subr.bf16.mxu0 %v487
        %519 = vmatpush1.bf16.msra.mxu0 %v486
        %520 = vmatprep.subr.bf16.mxu0 0
        %521 = vmatpush1.bf16.msra.mxu0 0
        %522 = vmatprep.subr.bf16.mxu0 0
        %523 = vmatpush1.bf16.msra.mxu0 0
        %524 = vmatprep.subr.bf16.mxu0 0
        %525 = vmatpush1.bf16.msra.mxu0 0
        %526 = vmatprep.subr.bf16.mxu0 0
        %527 = vmatpush1.bf16.msra.mxu0 0
        %528 = vmatprep.subr.bf16.mxu0 0
        %529 = vmatpush1.bf16.msra.mxu0 0
        %530 = vmatprep.subr.bf16.mxu0 0
        %531 = vmatpush1.bf16.msra.mxu0 0
        %532 = vmatprep.subr.bf16.mxu0 0
        %533 = vmatpush1.bf16.msra.mxu0 0
        %534 = vmatprep.subr.bf16.mxu0 0
        %535 = vmatpush1.bf16.msra.mxu0 0
        %536 = vmatprep.mubr.bf16.mxu0 0
        %537 = vmatmul.mubr.bf16.gmra.mrb[0].mxu0 %v364
        %v538 = vpop.f32.mrb[0].mxu0
        %v539 = vadd.f32 %v417, %v538
        %v540 = vpop.f32.mrb[0].mxu0
        %v541 = vadd.f32 %v421, %v540
        %v542 = vpop.f32.mrb[0].mxu0
        %v543 = vadd.f32 %v417, %v542
        %v544 = vpop.f32.mrb[0].mxu0
        %v545 = vadd.f32 %v421, %v544
        %546 = vmatprep.mubr.bf16.mxu0 0
        %547 = vmatmul.mubr.bf16.gmra.mrb[0].mxu0 %v365
        %v548 = vpop.f32.mrb[0].mxu0
        %v549 = vadd.f32 %v417, %v548
        %v550 = vpop.f32.mrb[0].mxu0
        %v551 = vadd.f32 %v421, %v550
        %v552 = vpop.f32.mrb[0].mxu0
        %v553 = vadd.f32 %v417, %v552
        %v554 = vpop.f32.mrb[0].mxu0
        %v555 = vadd.f32 %v421, %v554
        %556 = vmatprep.mubr.bf16.mxu0 0
        %557 = vmatmul.mubr.bf16.gmra.mrb[0].mxu0 %v366
        %v558 = vpop.f32.mrb[0].mxu0
        %v559 = vadd.f32 %v417, %v558
        %v560 = vpop.f32.mrb[0].mxu0
        %v561 = vadd.f32 %v421, %v560
        %v562 = vpop.f32.mrb[0].mxu0
        %v563 = vadd.f32 %v417, %v562
        %v564 = vpop.f32.mrb[0].mxu0
        %v565 = vadd.f32 %v421, %v564
        %566 = vmatprep.mubr.bf16.mxu0 0
        %567 = vmatmul.mubr.bf16.gmra.mrb[0].mxu0 %v367
        %v568 = vpop.f32.mrb[0].mxu0
        %v569 = vadd.f32 %v417, %v568
        %v570 = vpop.f32.mrb[0].mxu0
        %v571 = vadd.f32 %v421, %v570
        %v572 = vpop.f32.mrb[0].mxu0
        %v573 = vadd.f32 %v417, %v572
        %v574 = vpop.f32.mrb[0].mxu0
        %v575 = vadd.f32 %v421, %v574
        %576 = vmatprep.mubr.bf16.mxu0 0
        %577 = vmatmul.mubr.bf16.gmra.mrb[0].mxu0 %v368
        %v578 = vpop.f32.mrb[0].mxu0
        %v579 = vadd.f32 %v417, %v578
        %v580 = vpop.f32.mrb[0].mxu0
        %v581 = vadd.f32 %v421, %v580
        %v582 = vpop.f32.mrb[0].mxu0
        %v583 = vadd.f32 %v417, %v582
        %v584 = vpop.f32.mrb[0].mxu0
        %v585 = vadd.f32 %v421, %v584
        %586 = vmatprep.mubr.bf16.mxu0 0
        %587 = vmatmul.mubr.bf16.gmra.mrb[0].mxu0 %v369
        %v588 = vpop.f32.mrb[0].mxu0
        %v589 = vadd.f32 %v417, %v588
        %v590 = vpop.f32.mrb[0].mxu0
        %v591 = vadd.f32 %v421, %v590
        %v592 = vpop.f32.mrb[0].mxu0
        %v593 = vadd.f32 %v417, %v592
        %v594 = vpop.f32.mrb[0].mxu0
        %v595 = vadd.f32 %v421, %v594
        %596 = vmatprep.mubr.bf16.mxu0 0
        %597 = vmatmul.mubr.bf16.gmra.mrb[0].mxu0 %v370
        %v598 = vpop.f32.mrb[0].mxu0
        %v599 = vadd.f32 %v417, %v598
        %v600 = vpop.f32.mrb[0].mxu0
        %v601 = vadd.f32 %v421, %v600
        %v602 = vpop.f32.mrb[0].mxu0
        %v603 = vadd.f32 %v417, %v602
        %v604 = vpop.f32.mrb[0].mxu0
        %v605 = vadd.f32 %v421, %v604
        %606 = vmatprep.mubr.bf16.mxu0 0
        %607 = vmatmul.mubr.bf16.gmra.mrb[0].mxu0 %v371
        %v608 = vpop.f32.mrb[0].mxu0
        %v609 = vadd.f32 %v417, %v608
        %v610 = vpop.f32.mrb[0].mxu0
        %v611 = vadd.f32 %v421, %v610
        %v612 = vpop.f32.mrb[0].mxu0
        %v613 = vadd.f32 %v417, %v612
        %v614 = vpop.f32.mrb[0].mxu0
        %v615 = vadd.f32 %v421, %v614
        %616 = vmatprep.mubr.bf16.mxu0 0
        %617 = vmatmul.mubr.bf16.gmra.mrb[0].mxu0 %v372
        %v618 = vpop.f32.mrb[0].mxu0
        %v619 = vadd.f32 %v417, %v618
        %v620 = vpop.f32.mrb[0].mxu0
        %v621 = vadd.f32 %v421, %v620
        %v622 = vpop.f32.mrb[0].mxu0
        %v623 = vadd.f32 %v417, %v622
        %v624 = vpop.f32.mrb[0].mxu0
        %v625 = vadd.f32 %v421, %v624
        %626 = vmatprep.mubr.bf16.mxu0 0
        %627 = vmatmul.mubr.bf16.gmra.mrb[0].mxu0 %v373
        %v628 = vpop.f32.mrb[0].mxu0
        %v629 = vadd.f32 %v417, %v628
        %v630 = vpop.f32.mrb[0].mxu0
        %v631 = vadd.f32 %v421, %v630
        %v632 = vpop.f32.mrb[0].mxu0
        %v633 = vadd.f32 %v417, %v632
        %v634 = vpop.f32.mrb[0].mxu0
        %v635 = vadd.f32 %v421, %v634
        %636 = vmatprep.mubr.bf16.mxu0 0
        %637 = vmatmul.mubr.bf16.gmra.mrb[0].mxu0 %v374
        %v638 = vpop.f32.mrb[0].mxu0
        %v639 = vadd.f32 %v417, %v638
        %v640 = vpop.f32.mrb[0].mxu0
        %v641 = vadd.f32 %v421, %v640
        %v642 = vpop.f32.mrb[0].mxu0
        %v643 = vadd.f32 %v417, %v642
        %v644 = vpop.f32.mrb[0].mxu0
        %v645 = vadd.f32 %v421, %v644
        %646 = vmatprep.mubr.bf16.mxu0 0
        %647 = vmatmul.mubr.bf16.gmra.mrb[0].mxu0 %v375
        %v648 = vpop.f32.mrb[0].mxu0
        %v649 = vadd.f32 %v417, %v648
        %v650 = vpop.f32.mrb[0].mxu0
        %v651 = vadd.f32 %v421, %v650
        %v652 = vpop.f32.mrb[0].mxu0
        %v653 = vadd.f32 %v417, %v652
        %v654 = vpop.f32.mrb[0].mxu0
        %v655 = vadd.f32 %v421, %v654
        %656 = vmatprep.mubr.bf16.mxu0 0
        %657 = vmatmul.mubr.bf16.gmra.mrb[0].mxu0 %v376
        %v658 = vpop.f32.mrb[0].mxu0
        %v659 = vadd.f32 %v417, %v658
        %v660 = vpop.f32.mrb[0].mxu0
        %v661 = vadd.f32 %v421, %v660
        %v662 = vpop.f32.mrb[0].mxu0
        %v663 = vadd.f32 %v417, %v662
        %v664 = vpop.f32.mrb[0].mxu0
        %v665 = vadd.f32 %v421, %v664
        %666 = vmatprep.mubr.bf16.mxu0 0
        %667 = vmatmul.mubr.bf16.gmra.mrb[0].mxu0 %v377
        %v668 = vpop.f32.mrb[0].mxu0
        %v669 = vadd.f32 %v417, %v668
        %v670 = vpop.f32.mrb[0].mxu0
        %v671 = vadd.f32 %v421, %v670
        %v672 = vpop.f32.mrb[0].mxu0
        %v673 = vadd.f32 %v417, %v672
        %v674 = vpop.f32.mrb[0].mxu0
        %v675 = vadd.f32 %v421, %v674
        %676 = vmatprep.mubr.bf16.mxu0 0
        %677 = vmatmul.mubr.bf16.gmra.mrb[0].mxu0 %v378
        %v678 = vpop.f32.mrb[0].mxu0
        %v679 = vadd.f32 %v417, %v678
        %v680 = vpop.f32.mrb[0].mxu0
        %v681 = vadd.f32 %v421, %v680
        %v682 = vpop.f32.mrb[0].mxu0
        %v683 = vadd.f32 %v417, %v682
        %v684 = vpop.f32.mrb[0].mxu0
        %v685 = vadd.f32 %v421, %v684
        %686 = vmatprep.mubr.bf16.mxu0 0
        %687 = vmatmul.mubr.bf16.gmra.mrb[0].mxu0 %v379
        %v688 = vpop.f32.mrb[0].mxu0
        %v689 = vadd.f32 %v417, %v688
        %v690 = vpop.f32.mrb[0].mxu0
        %v691 = vadd.f32 %v421, %v690
        %v692 = vpop.f32.mrb[0].mxu0
        %v693 = vadd.f32 %v417, %v692
        %v694 = vpop.f32.mrb[0].mxu0
        %v695 = vadd.f32 %v421, %v694
        %696 = vmatprep.mubr.bf16.mxu0 0
        %697 = vmatmul.mubr.bf16.gmra.mrb[0].mxu0 %v380
        %v698 = vpop.f32.mrb[0].mxu0
        %v699 = vadd.f32 %v417, %v698
        %v700 = vpop.f32.mrb[0].mxu0
        %v701 = vadd.f32 %v421, %v700
        %v702 = vpop.f32.mrb[0].mxu0
        %v703 = vadd.f32 %v417, %v702
        %v704 = vpop.f32.mrb[0].mxu0
        %v705 = vadd.f32 %v421, %v704
        %706 = vmatprep.mubr.bf16.mxu0 0
        %707 = vmatmul.mubr.bf16.gmra.mrb[0].mxu0 %v381
        %v708 = vpop.f32.mrb[0].mxu0
        %v709 = vadd.f32 %v417, %v708
        %v710 = vpop.f32.mrb[0].mxu0
        %v711 = vadd.f32 %v421, %v710
        %v712 = vpop.f32.mrb[0].mxu0
        %v713 = vadd.f32 %v417, %v712
        %v714 = vpop.f32.mrb[0].mxu0
        %v715 = vadd.f32 %v421, %v714
        %716 = vmatprep.mubr.bf16.mxu0 0
        %717 = vmatmul.mubr.bf16.gmra.mrb[0].mxu0 %v382
        %v718 = vpop.f32.mrb[0].mxu0
        %v719 = vadd.f32 %v417, %v718
        %v720 = vpop.f32.mrb[0].mxu0
        %v721 = vadd.f32 %v421, %v720
        %v722 = vpop.f32.mrb[0].mxu0
        %v723 = vadd.f32 %v417, %v722
        %v724 = vpop.f32.mrb[0].mxu0
        %v725 = vadd.f32 %v421, %v724
        %726 = vmatprep.mubr.bf16.mxu0 0
        %727 = vmatmul.mubr.bf16.gmra.mrb[0].mxu0 %v383
        %v728 = vpop.f32.mrb[0].mxu0
        %v729 = vadd.f32 %v417, %v728
        %v730 = vpop.f32.mrb[0].mxu0
        %v731 = vadd.f32 %v421, %v730
        %v732 = vpop.f32.mrb[0].mxu0
        %v733 = vadd.f32 %v417, %v732
        %v734 = vpop.f32.mrb[0].mxu0
        %v735 = vadd.f32 %v421, %v734
        %736 = vmatprep.mubr.bf16.mxu0 0
        %737 = vmatmul.mubr.bf16.gmra.mrb[0].mxu0 %v384
        %v738 = vpop.f32.mrb[0].mxu0
        %v739 = vadd.f32 %v417, %v738
        %v740 = vpop.f32.mrb[0].mxu0
        %v741 = vadd.f32 %v421, %v740
        %v742 = vpop.f32.mrb[0].mxu0
        %v743 = vadd.f32 %v417, %v742
        %v744 = vpop.f32.mrb[0].mxu0
        %v745 = vadd.f32 %v421, %v744
        %746 = vmatprep.mubr.bf16.mxu0 0
        %747 = vmatmul.mubr.bf16.gmra.mrb[0].mxu0 %v385
        %v748 = vpop.f32.mrb[0].mxu0
        %v749 = vadd.f32 %v417, %v748
        %v750 = vpop.f32.mrb[0].mxu0
        %v751 = vadd.f32 %v421, %v750
        %v752 = vpop.f32.mrb[0].mxu0
        %v753 = vadd.f32 %v417, %v752
        %v754 = vpop.f32.mrb[0].mxu0
        %v755 = vadd.f32 %v421, %v754
        %756 = vmatprep.mubr.bf16.mxu0 0
        %757 = vmatmul.mubr.bf16.gmra.mrb[0].mxu0 %v386
        %v758 = vpop.f32.mrb[0].mxu0
        %v759 = vadd.f32 %v417, %v758
        %v760 = vpop.f32.mrb[0].mxu0
        %v761 = vadd.f32 %v421, %v760
        %v762 = vpop.f32.mrb[0].mxu0
        %v763 = vadd.f32 %v417, %v762
        %v764 = vpop.f32.mrb[0].mxu0
        %v765 = vadd.f32 %v421, %v764
        %766 = vmatprep.mubr.bf16.mxu0 0
        %767 = vmatmul.mubr.bf16.gmra.mrb[0].mxu0 %v387
        %v768 = vpop.f32.mrb[0].mxu0
        %v769 = vadd.f32 %v417, %v768
        %v770 = vpop.f32.mrb[0].mxu0
        %v771 = vadd.f32 %v421, %v770
        %v772 = vpop.f32.mrb[0].mxu0
        %v773 = vadd.f32 %v417, %v772
        %v774 = vpop.f32.mrb[0].mxu0
        %v775 = vadd.f32 %v421, %v774
        %776 = vmatprep.mubr.bf16.mxu0 0
        %777 = vmatmul.mubr.bf16.gmra.mrb[0].mxu0 %v388
        %v778 = vpop.f32.mrb[0].mxu0
        %v779 = vadd.f32 %v417, %v778
        %v780 = vpop.f32.mrb[0].mxu0
        %v781 = vadd.f32 %v421, %v780
        %v782 = vpop.f32.mrb[0].mxu0
        %v783 = vadd.f32 %v417, %v782
        %v784 = vpop.f32.mrb[0].mxu0
        %v785 = vadd.f32 %v421, %v784
        %786 = vmatprep.mubr.bf16.mxu0 0
        %787 = vmatmul.mubr.bf16.gmra.mrb[0].mxu0 %v389
        %v788 = vpop.f32.mrb[0].mxu0
        %v789 = vadd.f32 %v417, %v788
        %v790 = vpop.f32.mrb[0].mxu0
        %v791 = vadd.f32 %v421, %v790
        %v792 = vpop.f32.mrb[0].mxu0
        %v793 = vadd.f32 %v417, %v792
        %v794 = vpop.f32.mrb[0].mxu0
        %v795 = vadd.f32 %v421, %v794
        %796 = vmatprep.mubr.bf16.mxu0 0
        %797 = vmatmul.mubr.bf16.gmra.mrb[0].mxu0 %v390
        %v798 = vpop.f32.mrb[0].mxu0
        %v799 = vadd.f32 %v417, %v798
        %v800 = vpop.f32.mrb[0].mxu0
        %v801 = vadd.f32 %v421, %v800
        %v802 = vpop.f32.mrb[0].mxu0
        %v803 = vadd.f32 %v417, %v802
        %v804 = vpop.f32.mrb[0].mxu0
        %v805 = vadd.f32 %v421, %v804
        %806 = vmatprep.mubr.bf16.mxu0 0
        %807 = vmatmul.mubr.bf16.gmra.mrb[0].mxu0 %v391
        %v808 = vpop.f32.mrb[0].mxu0
        %v809 = vadd.f32 %v417, %v808
        %v810 = vpop.f32.mrb[0].mxu0
        %v811 = vadd.f32 %v421, %v810
        %v812 = vpop.f32.mrb[0].mxu0
        %v813 = vadd.f32 %v417, %v812
        %v814 = vpop.f32.mrb[0].mxu0
        %v815 = vadd.f32 %v421, %v814
        %816 = vmatprep.mubr.bf16.mxu0 0
        %817 = vmatmul.mubr.bf16.gmra.mrb[0].mxu0 %v392
        %v818 = vpop.f32.mrb[0].mxu0
        %v819 = vadd.f32 %v417, %v818
        %v820 = vpop.f32.mrb[0].mxu0
        %v821 = vadd.f32 %v421, %v820
        %v822 = vpop.f32.mrb[0].mxu0
        %v823 = vadd.f32 %v417, %v822
        %v824 = vpop.f32.mrb[0].mxu0
        %v825 = vadd.f32 %v421, %v824
        %826 = vmatprep.mubr.bf16.mxu0 0
        %827 = vmatmul.mubr.bf16.gmra.mrb[0].mxu0 %v393
        %v828 = vpop.f32.mrb[0].mxu0
        %v829 = vadd.f32 %v417, %v828
        %v830 = vpop.f32.mrb[0].mxu0
        %v831 = vadd.f32 %v421, %v830
        %v832 = vpop.f32.mrb[0].mxu0
        %v833 = vadd.f32 %v417, %v832
        %v834 = vpop.f32.mrb[0].mxu0
        %v835 = vadd.f32 %v421, %v834
        %836 = vmatprep.mubr.bf16.mxu0 0
        %837 = vmatmul.mubr.bf16.gmra.mrb[0].mxu0 %v394
        %v838 = vpop.f32.mrb[0].mxu0
        %v839 = vadd.f32 %v417, %v838
        %v840 = vpop.f32.mrb[0].mxu0
        %v841 = vadd.f32 %v421, %v840
        %v842 = vpop.f32.mrb[0].mxu0
        %v843 = vadd.f32 %v417, %v842
        %v844 = vpop.f32.mrb[0].mxu0
        %v845 = vadd.f32 %v421, %v844
        %846 = vmatprep.mubr.bf16.mxu0 0
        %847 = vmatmul.mubr.bf16.gmra.mrb[0].mxu0 %v395
        %v848 = vpop.f32.mrb[0].mxu0
        %v849 = vadd.f32 %v417, %v848
        %v850 = vpop.f32.mrb[0].mxu0
        %v851 = vadd.f32 %v421, %v850
        %v852 = vpop.f32.mrb[0].mxu0
        %v853 = vadd.f32 %v417, %v852
        %v854 = vpop.f32.mrb[0].mxu0
        %v855 = vadd.f32 %v421, %v854
        %856 = vdwg.mxu0
        %v857 = vmax.f32 %v539, 0.0
        %v858 = vmax.f32 %v541, 0.0
        %v859 = vmax.f32 %v543, 0.0
        %v860 = vmax.f32 %v545, 0.0
        %v861 = vmax.f32 %v549, 0.0
        %v862 = vmax.f32 %v551, 0.0
        %v863 = vmax.f32 %v553, 0.0
        %v864 = vmax.f32 %v555, 0.0
        %v865 = vmax.f32 %v559, 0.0
        %v866 = vmax.f32 %v561, 0.0
        %v867 = vmax.f32 %v563, 0.0
        %v868 = vmax.f32 %v565, 0.0
        %v869 = vmax.f32 %v569, 0.0
        %v870 = vmax.f32 %v571, 0.0
        %v871 = vmax.f32 %v573, 0.0
        %v872 = vmax.f32 %v575, 0.0
        %v873 = vmax.f32 %v579, 0.0
        %v874 = vmax.f32 %v581, 0.0
        %v875 = vmax.f32 %v583, 0.0
        %v876 = vmax.f32 %v585, 0.0
        %v877 = vmax.f32 %v589, 0.0
        %v878 = vmax.f32 %v591, 0.0
        %v879 = vmax.f32 %v593, 0.0
        %v880 = vmax.f32 %v595, 0.0
        %v881 = vmax.f32 %v599, 0.0
        %v882 = vmax.f32 %v601, 0.0
        %v883 = vmax.f32 %v603, 0.0
        %v884 = vmax.f32 %v605, 0.0
        %v885 = vmax.f32 %v609, 0.0
        %v886 = vmax.f32 %v611, 0.0
        %v887 = vmax.f32 %v613, 0.0
        %v888 = vmax.f32 %v615, 0.0
        %v889 = vmax.f32 %v619, 0.0
        %v890 = vmax.f32 %v621, 0.0
        %v891 = vmax.f32 %v623, 0.0
        %v892 = vmax.f32 %v625, 0.0
        %v893 = vmax.f32 %v629, 0.0
        %v894 = vmax.f32 %v631, 0.0
        %v895 = vmax.f32 %v633, 0.0
        %v896 = vmax.f32 %v635, 0.0
        %v897 = vmax.f32 %v639, 0.0
        %v898 = vmax.f32 %v641, 0.0
        %v899 = vmax.f32 %v643, 0.0
        %v900 = vmax.f32 %v645, 0.0
        %v901 = vmax.f32 %v649, 0.0
        %v902 = vmax.f32 %v651, 0.0
        %v903 = vmax.f32 %v653, 0.0
        %v904 = vmax.f32 %v655, 0.0
        %v905 = vmax.f32 %v659, 0.0
        %v906 = vmax.f32 %v661, 0.0
        %v907 = vmax.f32 %v663, 0.0
        %v908 = vmax.f32 %v665, 0.0
        %v909 = vmax.f32 %v669, 0.0
        %v910 = vmax.f32 %v671, 0.0
        %v911 = vmax.f32 %v673, 0.0
        %v912 = vmax.f32 %v675, 0.0
        %v913 = vmax.f32 %v679, 0.0
        %v914 = vmax.f32 %v681, 0.0
        %v915 = vmax.f32 %v683, 0.0
        %v916 = vmax.f32 %v685, 0.0
        %v917 = vmax.f32 %v689, 0.0
        %v918 = vmax.f32 %v691, 0.0
        %v919 = vmax.f32 %v693, 0.0
        %v920 = vmax.f32 %v695, 0.0
        %v921 = vmax.f32 %v699, 0.0
        %v922 = vmax.f32 %v701, 0.0
        %v923 = vmax.f32 %v703, 0.0
        %v924 = vmax.f32 %v705, 0.0
        %v925 = vmax.f32 %v709, 0.0
        %v926 = vmax.f32 %v711, 0.0
        %v927 = vmax.f32 %v713, 0.0
        %v928 = vmax.f32 %v715, 0.0
        %v929 = vmax.f32 %v719, 0.0
        %v930 = vmax.f32 %v721, 0.0
        %v931 = vmax.f32 %v723, 0.0
        %v932 = vmax.f32 %v725, 0.0
        %v933 = vmax.f32 %v729, 0.0
        %v934 = vmax.f32 %v731, 0.0
        %v935 = vmax.f32 %v733, 0.0
        %v936 = vmax.f32 %v735, 0.0
        %v937 = vmax.f32 %v739, 0.0
        %v938 = vmax.f32 %v741, 0.0
        %v939 = vmax.f32 %v743, 0.0
        %v940 = vmax.f32 %v745, 0.0
        %v941 = vmax.f32 %v749, 0.0
        %v942 = vmax.f32 %v751, 0.0
        %v943 = vmax.f32 %v753, 0.0
        %v944 = vmax.f32 %v755, 0.0
        %v945 = vmax.f32 %v759, 0.0
        %v946 = vmax.f32 %v761, 0.0
        %v947 = vmax.f32 %v763, 0.0
        %v948 = vmax.f32 %v765, 0.0
        %v949 = vmax.f32 %v769, 0.0
        %v950 = vmax.f32 %v771, 0.0
        %v951 = vmax.f32 %v773, 0.0
        %v952 = vmax.f32 %v775, 0.0
        %v953 = vmax.f32 %v779, 0.0
        %v954 = vmax.f32 %v781, 0.0
        %v955 = vmax.f32 %v783, 0.0
        %v956 = vmax.f32 %v785, 0.0
        %v957 = vmax.f32 %v789, 0.0
        %v958 = vmax.f32 %v791, 0.0
        %v959 = vmax.f32 %v793, 0.0
        %v960 = vmax.f32 %v795, 0.0
        %v961 = vmax.f32 %v799, 0.0
        %v962 = vmax.f32 %v801, 0.0
        %v963 = vmax.f32 %v803, 0.0
        %v964 = vmax.f32 %v805, 0.0
        %v965 = vmax.f32 %v809, 0.0
        %v966 = vmax.f32 %v811, 0.0
        %v967 = vmax.f32 %v813, 0.0
        %v968 = vmax.f32 %v815, 0.0
        %v969 = vmax.f32 %v819, 0.0
        %v970 = vmax.f32 %v821, 0.0
        %v971 = vmax.f32 %v823, 0.0
        %v972 = vmax.f32 %v825, 0.0
        %v973 = vmax.f32 %v829, 0.0
        %v974 = vmax.f32 %v831, 0.0
        %v975 = vmax.f32 %v833, 0.0
        %v976 = vmax.f32 %v835, 0.0
        %v977 = vmax.f32 %v839, 0.0
        %v978 = vmax.f32 %v841, 0.0
        %v979 = vmax.f32 %v843, 0.0
        %v980 = vmax.f32 %v845, 0.0
        %v981 = vmax.f32 %v849, 0.0
        %v982 = vmax.f32 %v851, 0.0
        %v983 = vmax.f32 %v853, 0.0
        %v984 = vmax.f32 %v855, 0.0
        %v985 = vpack.c.bf16 %v859, %v857
        %v986 = vpack.c.bf16 %v860, %v858
        %v987 = vpack.c.bf16 %v863, %v861
        %v988 = vpack.c.bf16 %v864, %v862
        %v989 = vpack.c.bf16 %v867, %v865
        %v990 = vpack.c.bf16 %v868, %v866
        %v991 = vpack.c.bf16 %v871, %v869
        %v992 = vpack.c.bf16 %v872, %v870
        %v993 = vpack.c.bf16 %v875, %v873
        %v994 = vpack.c.bf16 %v876, %v874
        %v995 = vpack.c.bf16 %v879, %v877
        %v996 = vpack.c.bf16 %v880, %v878
        %v997 = vpack.c.bf16 %v883, %v881
        %v998 = vpack.c.bf16 %v884, %v882
        %v999 = vpack.c.bf16 %v887, %v885
        %v1000 = vpack.c.bf16 %v888, %v886
        %v1001 = vpack.c.bf16 %v891, %v889
        %v1002 = vpack.c.bf16 %v892, %v890
        %v1003 = vpack.c.bf16 %v895, %v893
        %v1004 = vpack.c.bf16 %v896, %v894
        %v1005 = vpack.c.bf16 %v899, %v897
        %v1006 = vpack.c.bf16 %v900, %v898
        %v1007 = vpack.c.bf16 %v903, %v901
        %v1008 = vpack.c.bf16 %v904, %v902
        %v1009 = vpack.c.bf16 %v907, %v905
        %v1010 = vpack.c.bf16 %v908, %v906
        %v1011 = vpack.c.bf16 %v911, %v909
        %v1012 = vpack.c.bf16 %v912, %v910
        %v1013 = vpack.c.bf16 %v915, %v913
        %v1014 = vpack.c.bf16 %v916, %v914
        %v1015 = vpack.c.bf16 %v919, %v917
        %v1016 = vpack.c.bf16 %v920, %v918
        %v1017 = vpack.c.bf16 %v923, %v921
        %v1018 = vpack.c.bf16 %v924, %v922
        %v1019 = vpack.c.bf16 %v927, %v925
        %v1020 = vpack.c.bf16 %v928, %v926
        %v1021 = vpack.c.bf16 %v931, %v929
        %v1022 = vpack.c.bf16 %v932, %v930
        %v1023 = vpack.c.bf16 %v935, %v933
        %v1024 = vpack.c.bf16 %v936, %v934
        %v1025 = vpack.c.bf16 %v939, %v937
        %v1026 = vpack.c.bf16 %v940, %v938
        %v1027 = vpack.c.bf16 %v943, %v941
        %v1028 = vpack.c.bf16 %v944, %v942
        %v1029 = vpack.c.bf16 %v947, %v945
        %v1030 = vpack.c.bf16 %v948, %v946
        %v1031 = vpack.c.bf16 %v951, %v949
        %v1032 = vpack.c.bf16 %v952, %v950
        %v1033 = vpack.c.bf16 %v955, %v953
        %v1034 = vpack.c.bf16 %v956, %v954
        %v1035 = vpack.c.bf16 %v959, %v957
        %v1036 = vpack.c.bf16 %v960, %v958
        %v1037 = vpack.c.bf16 %v963, %v961
        %v1038 = vpack.c.bf16 %v964, %v962
        %v1039 = vpack.c.bf16 %v967, %v965
        %v1040 = vpack.c.bf16 %v968, %v966
        %v1041 = vpack.c.bf16 %v971, %v969
        %v1042 = vpack.c.bf16 %v972, %v970
        %v1043 = vpack.c.bf16 %v975, %v973
        %v1044 = vpack.c.bf16 %v976, %v974
        %v1045 = vpack.c.bf16 %v979, %v977
        %v1046 = vpack.c.bf16 %v980, %v978
        %v1047 = vpack.c.bf16 %v983, %v981
        %v1048 = vpack.c.bf16 %v984, %v982
        %v1049 = vld [vmem:[%s3] sm:$0xf]
        %v1050 = vld [vmem:[%s3 + $0x4] sm:$0xf]
        %v1051 = vld [vmem:[%s3 + $0x8] sm:$0xf]
        %v1052 = vld [vmem:[%s3 + $0xc] sm:$0xf]
        %v1053 = vld [vmem:[%s3 + $0x10] sm:$0xf]
        %v1054 = vld [vmem:[%s3 + $0x14] sm:$0xf]
        %v1055 = vld [vmem:[%s3 + $0x18] sm:$0xf]
        %v1056 = vld [vmem:[%s3 + $0x1c] sm:$0xf]
        %v1057 = vld [vmem:[%s3 + $0x20] sm:$0xf]
        %v1058 = vld [vmem:[%s3 + $0x24] sm:$0xf]
        %v1059 = vld [vmem:[%s3 + $0x28] sm:$0xf]
        %v1060 = vld [vmem:[%s3 + $0x2c] sm:$0xf]
        %v1061 = vld [vmem:[%s3 + $0x30] sm:$0xf]
        %v1062 = vld [vmem:[%s3 + $0x34] sm:$0xf]
        %v1063 = vld [vmem:[%s3 + $0x38] sm:$0xf]
        %v1064 = vld [vmem:[%s3 + $0x3c] sm:$0xf]
        %v1065 = vld [vmem:[%s3 + $0x40] sm:$0xf]
        %v1066 = vld [vmem:[%s3 + $0x44] sm:$0xf]
        %v1067 = vld [vmem:[%s3 + $0x48] sm:$0xf]
        %v1068 = vld [vmem:[%s3 + $0x4c] sm:$0xf]
        %v1069 = vld [vmem:[%s3 + $0x50] sm:$0xf]
        %v1070 = vld [vmem:[%s3 + $0x54] sm:$0xf]
        %v1071 = vld [vmem:[%s3 + $0x58] sm:$0xf]
        %v1072 = vld [vmem:[%s3 + $0x5c] sm:$0xf]
        %v1073 = vld [vmem:[%s3 + $0x60] sm:$0xf]
        %v1074 = vld [vmem:[%s3 + $0x64] sm:$0xf]
        %v1075 = vld [vmem:[%s3 + $0x68] sm:$0xf]
        %v1076 = vld [vmem:[%s3 + $0x6c] sm:$0xf]
        %v1077 = vld [vmem:[%s3 + $0x70] sm:$0xf]
        %v1078 = vld [vmem:[%s3 + $0x74] sm:$0xf]
        %v1079 = vld [vmem:[%s3 + $0x78] sm:$0xf]
        %v1080 = vld [vmem:[%s3 + $0x7c] sm:$0xf]
        %v1081 = vld [vmem:[%s4] sm:$0x1]
        %v1083 = vlaneseq
        %v1084 = vshrl.u32 %v1083, 7
        %v1085 = vsub.s32 0, %v1084
        %v1086 = vrot.slane %v1081, %v1085
        %v1120 = vunpack.c.l.b16 %v1049
        %v1121 = vunpack.c.l.b16 %v1050
        %v1122 = vunpack.c.l.b16 %v1051
        %v1123 = vunpack.c.l.b16 %v1052
        %v1124 = vunpack.c.l.b16 %v1053
        %v1125 = vunpack.c.l.b16 %v1054
        %v1126 = vunpack.c.l.b16 %v1055
        %v1127 = vunpack.c.l.b16 %v1056
        %v1128 = vunpack.c.l.b16 %v1057
        %v1129 = vunpack.c.l.b16 %v1058
        %v1130 = vunpack.c.l.b16 %v1059
        %v1131 = vunpack.c.l.b16 %v1060
        %v1132 = vunpack.c.l.b16 %v1061
        %v1133 = vunpack.c.l.b16 %v1062
        %v1134 = vunpack.c.l.b16 %v1063
        %v1135 = vunpack.c.l.b16 %v1064
        %v1136 = vunpack.c.l.b16 %v1065
        %v1137 = vunpack.c.l.b16 %v1066
        %v1138 = vunpack.c.l.b16 %v1067
        %v1139 = vunpack.c.l.b16 %v1068
        %v1140 = vunpack.c.l.b16 %v1069
        %v1141 = vunpack.c.l.b16 %v1070
        %v1142 = vunpack.c.l.b16 %v1071
        %v1143 = vunpack.c.l.b16 %v1072
        %v1144 = vunpack.c.l.b16 %v1073
        %v1145 = vunpack.c.l.b16 %v1074
        %v1146 = vunpack.c.l.b16 %v1075
        %v1147 = vunpack.c.l.b16 %v1076
        %v1148 = vunpack.c.l.b16 %v1077
        %v1149 = vunpack.c.l.b16 %v1078
        %v1150 = vunpack.c.l.b16 %v1079
        %v1151 = vunpack.c.l.b16 %v1080
        %v1152 = vpack.c.b16 %v1121, %v1120
        %v1153 = vpack.c.b16 %v1123, %v1122
        %v1154 = vpack.c.b16 %v1125, %v1124
        %v1155 = vpack.c.b16 %v1127, %v1126
        %v1156 = vpack.c.b16 %v1129, %v1128
        %v1157 = vpack.c.b16 %v1131, %v1130
        %v1158 = vpack.c.b16 %v1133, %v1132
        %v1159 = vpack.c.b16 %v1135, %v1134
        %v1160 = vpack.c.b16 %v1137, %v1136
        %v1161 = vpack.c.b16 %v1139, %v1138
        %v1162 = vpack.c.b16 %v1141, %v1140
        %v1163 = vpack.c.b16 %v1143, %v1142
        %v1164 = vpack.c.b16 %v1145, %v1144
        %v1165 = vpack.c.b16 %v1147, %v1146
        %v1166 = vpack.c.b16 %v1149, %v1148
        %v1167 = vpack.c.b16 %v1151, %v1150
        %1184 = vmatprep.subr.bf16.mxu0 0
        %1185 = vmatpush1.bf16.msra.mxu0 %v1152
        %1186 = vmatprep.subr.bf16.mxu0 0
        %1187 = vmatpush1.bf16.msra.mxu0 %v1153
        %1188 = vmatprep.subr.bf16.mxu0 0
        %1189 = vmatpush1.bf16.msra.mxu0 %v1154
        %1190 = vmatprep.subr.bf16.mxu0 0
        %1191 = vmatpush1.bf16.msra.mxu0 %v1155
        %1192 = vmatprep.subr.bf16.mxu0 0
        %1193 = vmatpush1.bf16.msra.mxu0 %v1156
        %1194 = vmatprep.subr.bf16.mxu0 0
        %1195 = vmatpush1.bf16.msra.mxu0 %v1157
        %1196 = vmatprep.subr.bf16.mxu0 0
        %1197 = vmatpush1.bf16.msra.mxu0 %v1158
        %1198 = vmatprep.subr.bf16.mxu0 0
        %1199 = vmatpush1.bf16.msra.mxu0 %v1159
        %1200 = vmatprep.subr.bf16.mxu0 0
        %1201 = vmatpush1.bf16.msra.mxu0 %v1160
        %1202 = vmatprep.subr.bf16.mxu0 0
        %1203 = vmatpush1.bf16.msra.mxu0 %v1161
        %1204 = vmatprep.subr.bf16.mxu0 0
        %1205 = vmatpush1.bf16.msra.mxu0 %v1162
        %1206 = vmatprep.subr.bf16.mxu0 0
        %1207 = vmatpush1.bf16.msra.mxu0 %v1163
        %1208 = vmatprep.subr.bf16.mxu0 0
        %1209 = vmatpush1.bf16.msra.mxu0 %v1164
        %1210 = vmatprep.subr.bf16.mxu0 0
        %1211 = vmatpush1.bf16.msra.mxu0 %v1165
        %1212 = vmatprep.subr.bf16.mxu0 0
        %1213 = vmatpush1.bf16.msra.mxu0 %v1166
        %1214 = vmatprep.subr.bf16.mxu0 0
        %1215 = vmatpush1.bf16.msra.mxu0 %v1167
        %1216 = vmatprep.mubr.bf16.mxu0 %v986
        %1217 = vmatmul.mubr.bf16.gmra.mrb[0].mxu0 %v985
        %v1218 = vpop.f32.mrb[0].mxu0
        %v1219 = vadd.f32 %v1086, %v1218
        %v1220 = vpop.f32.mrb[0].mxu0
        %v1221 = vpop.f32.mrb[0].mxu0
        %v1222 = vadd.f32 %v1086, %v1221
        %v1223 = vpop.f32.mrb[0].mxu0
        %1224 = vmatprep.mubr.bf16.mxu0 %v988
        %1225 = vmatmul.mubr.bf16.gmra.mrb[0].mxu0 %v987
        %v1226 = vpop.f32.mrb[0].mxu0
        %v1227 = vadd.f32 %v1086, %v1226
        %v1228 = vpop.f32.mrb[0].mxu0
        %v1229 = vpop.f32.mrb[0].mxu0
        %v1230 = vadd.f32 %v1086, %v1229
        %v1231 = vpop.f32.mrb[0].mxu0
        %1232 = vmatprep.mubr.bf16.mxu0 %v990
        %1233 = vmatmul.mubr.bf16.gmra.mrb[0].mxu0 %v989
        %v1234 = vpop.f32.mrb[0].mxu0
        %v1235 = vadd.f32 %v1086, %v1234
        %v1236 = vpop.f32.mrb[0].mxu0
        %v1237 = vpop.f32.mrb[0].mxu0
        %v1238 = vadd.f32 %v1086, %v1237
        %v1239 = vpop.f32.mrb[0].mxu0
        %1240 = vmatprep.mubr.bf16.mxu0 %v992
        %1241 = vmatmul.mubr.bf16.gmra.mrb[0].mxu0 %v991
        %v1242 = vpop.f32.mrb[0].mxu0
        %v1243 = vadd.f32 %v1086, %v1242
        %v1244 = vpop.f32.mrb[0].mxu0
        %v1245 = vpop.f32.mrb[0].mxu0
        %v1246 = vadd.f32 %v1086, %v1245
        %v1247 = vpop.f32.mrb[0].mxu0
        %1248 = vmatprep.mubr.bf16.mxu0 %v994
        %1249 = vmatmul.mubr.bf16.gmra.mrb[0].mxu0 %v993
        %v1250 = vpop.f32.mrb[0].mxu0
        %v1251 = vadd.f32 %v1086, %v1250
        %v1252 = vpop.f32.mrb[0].mxu0
        %v1253 = vpop.f32.mrb[0].mxu0
        %v1254 = vadd.f32 %v1086, %v1253
        %v1255 = vpop.f32.mrb[0].mxu0
        %1256 = vmatprep.mubr.bf16.mxu0 %v996
        %1257 = vmatmul.mubr.bf16.gmra.mrb[0].mxu0 %v995
        %v1258 = vpop.f32.mrb[0].mxu0
        %v1259 = vadd.f32 %v1086, %v1258
        %v1260 = vpop.f32.mrb[0].mxu0
        %v1261 = vpop.f32.mrb[0].mxu0
        %v1262 = vadd.f32 %v1086, %v1261
        %v1263 = vpop.f32.mrb[0].mxu0
        %1264 = vmatprep.mubr.bf16.mxu0 %v998
        %1265 = vmatmul.mubr.bf16.gmra.mrb[0].mxu0 %v997
        %v1266 = vpop.f32.mrb[0].mxu0
        %v1267 = vadd.f32 %v1086, %v1266
        %v1268 = vpop.f32.mrb[0].mxu0
        %v1269 = vpop.f32.mrb[0].mxu0
        %v1270 = vadd.f32 %v1086, %v1269
        %v1271 = vpop.f32.mrb[0].mxu0
        %1272 = vmatprep.mubr.bf16.mxu0 %v1000
        %1273 = vmatmul.mubr.bf16.gmra.mrb[0].mxu0 %v999
        %v1274 = vpop.f32.mrb[0].mxu0
        %v1275 = vadd.f32 %v1086, %v1274
        %v1276 = vpop.f32.mrb[0].mxu0
        %v1277 = vpop.f32.mrb[0].mxu0
        %v1278 = vadd.f32 %v1086, %v1277
        %v1279 = vpop.f32.mrb[0].mxu0
        %1280 = vmatprep.mubr.bf16.mxu0 %v1002
        %1281 = vmatmul.mubr.bf16.gmra.mrb[0].mxu0 %v1001
        %v1282 = vpop.f32.mrb[0].mxu0
        %v1283 = vadd.f32 %v1086, %v1282
        %v1284 = vpop.f32.mrb[0].mxu0
        %v1285 = vpop.f32.mrb[0].mxu0
        %v1286 = vadd.f32 %v1086, %v1285
        %v1287 = vpop.f32.mrb[0].mxu0
        %1288 = vmatprep.mubr.bf16.mxu0 %v1004
        %1289 = vmatmul.mubr.bf16.gmra.mrb[0].mxu0 %v1003
        %v1290 = vpop.f32.mrb[0].mxu0
        %v1291 = vadd.f32 %v1086, %v1290
        %v1292 = vpop.f32.mrb[0].mxu0
        %v1293 = vpop.f32.mrb[0].mxu0
        %v1294 = vadd.f32 %v1086, %v1293
        %v1295 = vpop.f32.mrb[0].mxu0
        %1296 = vmatprep.mubr.bf16.mxu0 %v1006
        %1297 = vmatmul.mubr.bf16.gmra.mrb[0].mxu0 %v1005
        %v1298 = vpop.f32.mrb[0].mxu0
        %v1299 = vadd.f32 %v1086, %v1298
        %v1300 = vpop.f32.mrb[0].mxu0
        %v1301 = vpop.f32.mrb[0].mxu0
        %v1302 = vadd.f32 %v1086, %v1301
        %v1303 = vpop.f32.mrb[0].mxu0
        %1304 = vmatprep.mubr.bf16.mxu0 %v1008
        %1305 = vmatmul.mubr.bf16.gmra.mrb[0].mxu0 %v1007
        %v1306 = vpop.f32.mrb[0].mxu0
        %v1307 = vadd.f32 %v1086, %v1306
        %v1308 = vpop.f32.mrb[0].mxu0
        %v1309 = vpop.f32.mrb[0].mxu0
        %v1310 = vadd.f32 %v1086, %v1309
        %v1311 = vpop.f32.mrb[0].mxu0
        %1312 = vmatprep.mubr.bf16.mxu0 %v1010
        %1313 = vmatmul.mubr.bf16.gmra.mrb[0].mxu0 %v1009
        %v1314 = vpop.f32.mrb[0].mxu0
        %v1315 = vadd.f32 %v1086, %v1314
        %v1316 = vpop.f32.mrb[0].mxu0
        %v1317 = vpop.f32.mrb[0].mxu0
        %v1318 = vadd.f32 %v1086, %v1317
        %v1319 = vpop.f32.mrb[0].mxu0
        %1320 = vmatprep.mubr.bf16.mxu0 %v1012
        %1321 = vmatmul.mubr.bf16.gmra.mrb[0].mxu0 %v1011
        %v1322 = vpop.f32.mrb[0].mxu0
        %v1323 = vadd.f32 %v1086, %v1322
        %v1324 = vpop.f32.mrb[0].mxu0
        %v1325 = vpop.f32.mrb[0].mxu0
        %v1326 = vadd.f32 %v1086, %v1325
        %v1327 = vpop.f32.mrb[0].mxu0
        %1328 = vmatprep.mubr.bf16.mxu0 %v1014
        %1329 = vmatmul.mubr.bf16.gmra.mrb[0].mxu0 %v1013
        %v1330 = vpop.f32.mrb[0].mxu0
        %v1331 = vadd.f32 %v1086, %v1330
        %v1332 = vpop.f32.mrb[0].mxu0
        %v1333 = vpop.f32.mrb[0].mxu0
        %v1334 = vadd.f32 %v1086, %v1333
        %v1335 = vpop.f32.mrb[0].mxu0
        %1336 = vmatprep.mubr.bf16.mxu0 %v1016
        %1337 = vmatmul.mubr.bf16.gmra.mrb[0].mxu0 %v1015
        %v1338 = vpop.f32.mrb[0].mxu0
        %v1339 = vadd.f32 %v1086, %v1338
        %v1340 = vpop.f32.mrb[0].mxu0
        %v1341 = vpop.f32.mrb[0].mxu0
        %v1342 = vadd.f32 %v1086, %v1341
        %v1343 = vpop.f32.mrb[0].mxu0
        %1344 = vmatprep.mubr.bf16.mxu0 %v1018
        %1345 = vmatmul.mubr.bf16.gmra.mrb[0].mxu0 %v1017
        %v1346 = vpop.f32.mrb[0].mxu0
        %v1347 = vadd.f32 %v1086, %v1346
        %v1348 = vpop.f32.mrb[0].mxu0
        %v1349 = vpop.f32.mrb[0].mxu0
        %v1350 = vadd.f32 %v1086, %v1349
        %v1351 = vpop.f32.mrb[0].mxu0
        %1352 = vmatprep.mubr.bf16.mxu0 %v1020
        %1353 = vmatmul.mubr.bf16.gmra.mrb[0].mxu0 %v1019
        %v1354 = vpop.f32.mrb[0].mxu0
        %v1355 = vadd.f32 %v1086, %v1354
        %v1356 = vpop.f32.mrb[0].mxu0
        %v1357 = vpop.f32.mrb[0].mxu0
        %v1358 = vadd.f32 %v1086, %v1357
        %v1359 = vpop.f32.mrb[0].mxu0
        %1360 = vmatprep.mubr.bf16.mxu0 %v1022
        %1361 = vmatmul.mubr.bf16.gmra.mrb[0].mxu0 %v1021
        %v1362 = vpop.f32.mrb[0].mxu0
        %v1363 = vadd.f32 %v1086, %v1362
        %v1364 = vpop.f32.mrb[0].mxu0
        %v1365 = vpop.f32.mrb[0].mxu0
        %v1366 = vadd.f32 %v1086, %v1365
        %v1367 = vpop.f32.mrb[0].mxu0
        %1368 = vmatprep.mubr.bf16.mxu0 %v1024
        %1369 = vmatmul.mubr.bf16.gmra.mrb[0].mxu0 %v1023
        %v1370 = vpop.f32.mrb[0].mxu0
        %v1371 = vadd.f32 %v1086, %v1370
        %v1372 = vpop.f32.mrb[0].mxu0
        %v1373 = vpop.f32.mrb[0].mxu0
        %v1374 = vadd.f32 %v1086, %v1373
        %v1375 = vpop.f32.mrb[0].mxu0
        %1376 = vmatprep.mubr.bf16.mxu0 %v1026
        %1377 = vmatmul.mubr.bf16.gmra.mrb[0].mxu0 %v1025
        %v1378 = vpop.f32.mrb[0].mxu0
        %v1379 = vadd.f32 %v1086, %v1378
        %v1380 = vpop.f32.mrb[0].mxu0
        %v1381 = vpop.f32.mrb[0].mxu0
        %v1382 = vadd.f32 %v1086, %v1381
        %v1383 = vpop.f32.mrb[0].mxu0
        %1384 = vmatprep.mubr.bf16.mxu0 %v1028
        %1385 = vmatmul.mubr.bf16.gmra.mrb[0].mxu0 %v1027
        %v1386 = vpop.f32.mrb[0].mxu0
        %v1387 = vadd.f32 %v1086, %v1386
        %v1388 = vpop.f32.mrb[0].mxu0
        %v1389 = vpop.f32.mrb[0].mxu0
        %v1390 = vadd.f32 %v1086, %v1389
        %v1391 = vpop.f32.mrb[0].mxu0
        %1392 = vmatprep.mubr.bf16.mxu0 %v1030
        %1393 = vmatmul.mubr.bf16.gmra.mrb[0].mxu0 %v1029
        %v1394 = vpop.f32.mrb[0].mxu0
        %v1395 = vadd.f32 %v1086, %v1394
        %v1396 = vpop.f32.mrb[0].mxu0
        %v1397 = vpop.f32.mrb[0].mxu0
        %v1398 = vadd.f32 %v1086, %v1397
        %v1399 = vpop.f32.mrb[0].mxu0
        %1400 = vmatprep.mubr.bf16.mxu0 %v1032
        %1401 = vmatmul.mubr.bf16.gmra.mrb[0].mxu0 %v1031
        %v1402 = vpop.f32.mrb[0].mxu0
        %v1403 = vadd.f32 %v1086, %v1402
        %v1404 = vpop.f32.mrb[0].mxu0
        %v1405 = vpop.f32.mrb[0].mxu0
        %v1406 = vadd.f32 %v1086, %v1405
        %v1407 = vpop.f32.mrb[0].mxu0
        %1408 = vmatprep.mubr.bf16.mxu0 %v1034
        %1409 = vmatmul.mubr.bf16.gmra.mrb[0].mxu0 %v1033
        %v1410 = vpop.f32.mrb[0].mxu0
        %v1411 = vadd.f32 %v1086, %v1410
        %v1412 = vpop.f32.mrb[0].mxu0
        %v1413 = vpop.f32.mrb[0].mxu0
        %v1414 = vadd.f32 %v1086, %v1413
        %v1415 = vpop.f32.mrb[0].mxu0
        %1416 = vmatprep.mubr.bf16.mxu0 %v1036
        %1417 = vmatmul.mubr.bf16.gmra.mrb[0].mxu0 %v1035
        %v1418 = vpop.f32.mrb[0].mxu0
        %v1419 = vadd.f32 %v1086, %v1418
        %v1420 = vpop.f32.mrb[0].mxu0
        %v1421 = vpop.f32.mrb[0].mxu0
        %v1422 = vadd.f32 %v1086, %v1421
        %v1423 = vpop.f32.mrb[0].mxu0
        %1424 = vmatprep.mubr.bf16.mxu0 %v1038
        %1425 = vmatmul.mubr.bf16.gmra.mrb[0].mxu0 %v1037
        %v1426 = vpop.f32.mrb[0].mxu0
        %v1427 = vadd.f32 %v1086, %v1426
        %v1428 = vpop.f32.mrb[0].mxu0
        %v1429 = vpop.f32.mrb[0].mxu0
        %v1430 = vadd.f32 %v1086, %v1429
        %v1431 = vpop.f32.mrb[0].mxu0
        %1432 = vmatprep.mubr.bf16.mxu0 %v1040
        %1433 = vmatmul.mubr.bf16.gmra.mrb[0].mxu0 %v1039
        %v1434 = vpop.f32.mrb[0].mxu0
        %v1435 = vadd.f32 %v1086, %v1434
        %v1436 = vpop.f32.mrb[0].mxu0
        %v1437 = vpop.f32.mrb[0].mxu0
        %v1438 = vadd.f32 %v1086, %v1437
        %v1439 = vpop.f32.mrb[0].mxu0
        %1440 = vmatprep.mubr.bf16.mxu0 %v1042
        %1441 = vmatmul.mubr.bf16.gmra.mrb[0].mxu0 %v1041
        %v1442 = vpop.f32.mrb[0].mxu0
        %v1443 = vadd.f32 %v1086, %v1442
        %v1444 = vpop.f32.mrb[0].mxu0
        %v1445 = vpop.f32.mrb[0].mxu0
        %v1446 = vadd.f32 %v1086, %v1445
        %v1447 = vpop.f32.mrb[0].mxu0
        %1448 = vmatprep.mubr.bf16.mxu0 %v1044
        %1449 = vmatmul.mubr.bf16.gmra.mrb[0].mxu0 %v1043
        %v1450 = vpop.f32.mrb[0].mxu0
        %v1451 = vadd.f32 %v1086, %v1450
        %v1452 = vpop.f32.mrb[0].mxu0
        %v1453 = vpop.f32.mrb[0].mxu0
        %v1454 = vadd.f32 %v1086, %v1453
        %v1455 = vpop.f32.mrb[0].mxu0
        %1456 = vmatprep.mubr.bf16.mxu0 %v1046
        %1457 = vmatmul.mubr.bf16.gmra.mrb[0].mxu0 %v1045
        %v1458 = vpop.f32.mrb[0].mxu0
        %v1459 = vadd.f32 %v1086, %v1458
        %v1460 = vpop.f32.mrb[0].mxu0
        %v1461 = vpop.f32.mrb[0].mxu0
        %v1462 = vadd.f32 %v1086, %v1461
        %v1463 = vpop.f32.mrb[0].mxu0
        %1464 = vmatprep.mubr.bf16.mxu0 %v1048
        %1465 = vmatmul.mubr.bf16.gmra.mrb[0].mxu0 %v1047
        %v1466 = vpop.f32.mrb[0].mxu0
        %v1467 = vadd.f32 %v1086, %v1466
        %v1468 = vpop.f32.mrb[0].mxu0
        %v1469 = vpop.f32.mrb[0].mxu0
        %v1470 = vadd.f32 %v1086, %v1469
        %v1471 = vpop.f32.mrb[0].mxu0
        %1472 = vdwg.mxu0
        %v1473 = vadd.f32 %v300, %v1219
        %v1474 = vadd.f32 %v301, %v1222
        %v1475 = vadd.f32 %v302, %v1227
        %v1476 = vadd.f32 %v303, %v1230
        %v1477 = vadd.f32 %v304, %v1235
        %v1478 = vadd.f32 %v305, %v1238
        %v1479 = vadd.f32 %v306, %v1243
        %v1480 = vadd.f32 %v307, %v1246
        %v1481 = vadd.f32 %v308, %v1251
        %v1482 = vadd.f32 %v309, %v1254
        %v1483 = vadd.f32 %v310, %v1259
        %v1484 = vadd.f32 %v311, %v1262
        %v1485 = vadd.f32 %v312, %v1267
        %v1486 = vadd.f32 %v313, %v1270
        %v1487 = vadd.f32 %v314, %v1275
        %v1488 = vadd.f32 %v315, %v1278
        %v1489 = vadd.f32 %v316, %v1283
        %v1490 = vadd.f32 %v317, %v1286
        %v1491 = vadd.f32 %v318, %v1291
        %v1492 = vadd.f32 %v319, %v1294
        %v1493 = vadd.f32 %v320, %v1299
        %v1494 = vadd.f32 %v321, %v1302
        %v1495 = vadd.f32 %v322, %v1307
        %v1496 = vadd.f32 %v323, %v1310
        %v1497 = vadd.f32 %v324, %v1315
        %v1498 = vadd.f32 %v325, %v1318
        %v1499 = vadd.f32 %v326, %v1323
        %v1500 = vadd.f32 %v327, %v1326
        %v1501 = vadd.f32 %v328, %v1331
        %v1502 = vadd.f32 %v329, %v1334
        %v1503 = vadd.f32 %v330, %v1339
        %v1504 = vadd.f32 %v331, %v1342
        %v1505 = vadd.f32 %v332, %v1347
        %v1506 = vadd.f32 %v333, %v1350
        %v1507 = vadd.f32 %v334, %v1355
        %v1508 = vadd.f32 %v335, %v1358
        %v1509 = vadd.f32 %v336, %v1363
        %v1510 = vadd.f32 %v337, %v1366
        %v1511 = vadd.f32 %v338, %v1371
        %v1512 = vadd.f32 %v339, %v1374
        %v1513 = vadd.f32 %v340, %v1379
        %v1514 = vadd.f32 %v341, %v1382
        %v1515 = vadd.f32 %v342, %v1387
        %v1516 = vadd.f32 %v343, %v1390
        %v1517 = vadd.f32 %v344, %v1395
        %v1518 = vadd.f32 %v345, %v1398
        %v1519 = vadd.f32 %v346, %v1403
        %v1520 = vadd.f32 %v347, %v1406
        %v1521 = vadd.f32 %v348, %v1411
        %v1522 = vadd.f32 %v349, %v1414
        %v1523 = vadd.f32 %v350, %v1419
        %v1524 = vadd.f32 %v351, %v1422
        %v1525 = vadd.f32 %v352, %v1427
        %v1526 = vadd.f32 %v353, %v1430
        %v1527 = vadd.f32 %v354, %v1435
        %v1528 = vadd.f32 %v355, %v1438
        %v1529 = vadd.f32 %v356, %v1443
        %v1530 = vadd.f32 %v357, %v1446
        %v1531 = vadd.f32 %v358, %v1451
        %v1532 = vadd.f32 %v359, %v1454
        %v1533 = vadd.f32 %v360, %v1459
        %v1534 = vadd.f32 %v361, %v1462
        %v1535 = vadd.f32 %v362, %v1467
        %v1536 = vadd.f32 %v363, %v1470
        %1537 = vadd.xlane.f32.xlu0 %v1473
        %v1538 = vpop.xlane.xlu0 %1537
        %1539 = vadd.xlane.f32.xlu0 %v1474
        %v1540 = vpop.xlane.xlu0 %1539
        %1541 = vadd.xlane.f32.xlu0 %v1475
        %v1542 = vpop.xlane.xlu0 %1541
        %1543 = vadd.xlane.f32.xlu0 %v1476
        %v1544 = vpop.xlane.xlu0 %1543
        %1545 = vadd.xlane.f32.xlu0 %v1477
        %v1546 = vpop.xlane.xlu0 %1545
        %1547 = vadd.xlane.f32.xlu0 %v1478
        %v1548 = vpop.xlane.xlu0 %1547
        %1549 = vadd.xlane.f32.xlu0 %v1479
        %v1550 = vpop.xlane.xlu0 %1549
        %1551 = vadd.xlane.f32.xlu0 %v1480
        %v1552 = vpop.xlane.xlu0 %1551
        %1553 = vadd.xlane.f32.xlu0 %v1481
        %v1554 = vpop.xlane.xlu0 %1553
        %1555 = vadd.xlane.f32.xlu0 %v1482
        %v1556 = vpop.xlane.xlu0 %1555
        %1557 = vadd.xlane.f32.xlu0 %v1483
        %v1558 = vpop.xlane.xlu0 %1557
        %1559 = vadd.xlane.f32.xlu0 %v1484
        %v1560 = vpop.xlane.xlu0 %1559
        %1561 = vadd.xlane.f32.xlu0 %v1485
        %v1562 = vpop.xlane.xlu0 %1561
        %1563 = vadd.xlane.f32.xlu0 %v1486
        %v1564 = vpop.xlane.xlu0 %1563
        %1565 = vadd.xlane.f32.xlu0 %v1487
        %v1566 = vpop.xlane.xlu0 %1565
        %1567 = vadd.xlane.f32.xlu0 %v1488
        %v1568 = vpop.xlane.xlu0 %1567
        %1569 = vadd.xlane.f32.xlu0 %v1489
        %v1570 = vpop.xlane.xlu0 %1569
        %1571 = vadd.xlane.f32.xlu0 %v1490
        %v1572 = vpop.xlane.xlu0 %1571
        %1573 = vadd.xlane.f32.xlu0 %v1491
        %v1574 = vpop.xlane.xlu0 %1573
        %1575 = vadd.xlane.f32.xlu0 %v1492
        %v1576 = vpop.xlane.xlu0 %1575
        %1577 = vadd.xlane.f32.xlu0 %v1493
        %v1578 = vpop.xlane.xlu0 %1577
        %1579 = vadd.xlane.f32.xlu0 %v1494
        %v1580 = vpop.xlane.xlu0 %1579
        %1581 = vadd.xlane.f32.xlu0 %v1495
        %v1582 = vpop.xlane.xlu0 %1581
        %1583 = vadd.xlane.f32.xlu0 %v1496
        %v1584 = vpop.xlane.xlu0 %1583
        %1585 = vadd.xlane.f32.xlu0 %v1497
        %v1586 = vpop.xlane.xlu0 %1585
        %1587 = vadd.xlane.f32.xlu0 %v1498
        %v1588 = vpop.xlane.xlu0 %1587
        %1589 = vadd.xlane.f32.xlu0 %v1499
        %v1590 = vpop.xlane.xlu0 %1589
        %1591 = vadd.xlane.f32.xlu0 %v1500
        %v1592 = vpop.xlane.xlu0 %1591
        %1593 = vadd.xlane.f32.xlu0 %v1501
        %v1594 = vpop.xlane.xlu0 %1593
        %1595 = vadd.xlane.f32.xlu0 %v1502
        %v1596 = vpop.xlane.xlu0 %1595
        %1597 = vadd.xlane.f32.xlu0 %v1503
        %v1598 = vpop.xlane.xlu0 %1597
        %1599 = vadd.xlane.f32.xlu0 %v1504
        %v1600 = vpop.xlane.xlu0 %1599
        %1601 = vadd.xlane.f32.xlu0 %v1505
        %v1602 = vpop.xlane.xlu0 %1601
        %1603 = vadd.xlane.f32.xlu0 %v1506
        %v1604 = vpop.xlane.xlu0 %1603
        %1605 = vadd.xlane.f32.xlu0 %v1507
        %v1606 = vpop.xlane.xlu0 %1605
        %1607 = vadd.xlane.f32.xlu0 %v1508
        %v1608 = vpop.xlane.xlu0 %1607
        %1609 = vadd.xlane.f32.xlu0 %v1509
        %v1610 = vpop.xlane.xlu0 %1609
        %1611 = vadd.xlane.f32.xlu0 %v1510
        %v1612 = vpop.xlane.xlu0 %1611
        %1613 = vadd.xlane.f32.xlu0 %v1511
        %v1614 = vpop.xlane.xlu0 %1613
        %1615 = vadd.xlane.f32.xlu0 %v1512
        %v1616 = vpop.xlane.xlu0 %1615
        %1617 = vadd.xlane.f32.xlu0 %v1513
        %v1618 = vpop.xlane.xlu0 %1617
        %1619 = vadd.xlane.f32.xlu0 %v1514
        %v1620 = vpop.xlane.xlu0 %1619
        %1621 = vadd.xlane.f32.xlu0 %v1515
        %v1622 = vpop.xlane.xlu0 %1621
        %1623 = vadd.xlane.f32.xlu0 %v1516
        %v1624 = vpop.xlane.xlu0 %1623
        %1625 = vadd.xlane.f32.xlu0 %v1517
        %v1626 = vpop.xlane.xlu0 %1625
        %1627 = vadd.xlane.f32.xlu0 %v1518
        %v1628 = vpop.xlane.xlu0 %1627
        %1629 = vadd.xlane.f32.xlu0 %v1519
        %v1630 = vpop.xlane.xlu0 %1629
        %1631 = vadd.xlane.f32.xlu0 %v1520
        %v1632 = vpop.xlane.xlu0 %1631
        %1633 = vadd.xlane.f32.xlu0 %v1521
        %v1634 = vpop.xlane.xlu0 %1633
        %1635 = vadd.xlane.f32.xlu0 %v1522
        %v1636 = vpop.xlane.xlu0 %1635
        %1637 = vadd.xlane.f32.xlu0 %v1523
        %v1638 = vpop.xlane.xlu0 %1637
        %1639 = vadd.xlane.f32.xlu0 %v1524
        %v1640 = vpop.xlane.xlu0 %1639
        %1641 = vadd.xlane.f32.xlu0 %v1525
        %v1642 = vpop.xlane.xlu0 %1641
        %1643 = vadd.xlane.f32.xlu0 %v1526
        %v1644 = vpop.xlane.xlu0 %1643
        %1645 = vadd.xlane.f32.xlu0 %v1527
        %v1646 = vpop.xlane.xlu0 %1645
        %1647 = vadd.xlane.f32.xlu0 %v1528
        %v1648 = vpop.xlane.xlu0 %1647
        %1649 = vadd.xlane.f32.xlu0 %v1529
        %v1650 = vpop.xlane.xlu0 %1649
        %1651 = vadd.xlane.f32.xlu0 %v1530
        %v1652 = vpop.xlane.xlu0 %1651
        %1653 = vadd.xlane.f32.xlu0 %v1531
        %v1654 = vpop.xlane.xlu0 %1653
        %1655 = vadd.xlane.f32.xlu0 %v1532
        %v1656 = vpop.xlane.xlu0 %1655
        %1657 = vadd.xlane.f32.xlu0 %v1533
        %v1658 = vpop.xlane.xlu0 %1657
        %1659 = vadd.xlane.f32.xlu0 %v1534
        %v1660 = vpop.xlane.xlu0 %1659
        %1661 = vadd.xlane.f32.xlu0 %v1535
        %v1662 = vpop.xlane.xlu0 %1661
        %1663 = vadd.xlane.f32.xlu0 %v1536
        %v1664 = vpop.xlane.xlu0 %1663
        %v1665 = vrcp.pop 128.0
        %v1666 = vmul.f32 %v1538, %v1665
        %v1667 = vmul.f32 %v1540, %v1665
        %v1668 = vmul.f32 %v1542, %v1665
        %v1669 = vmul.f32 %v1544, %v1665
        %v1670 = vmul.f32 %v1546, %v1665
        %v1671 = vmul.f32 %v1548, %v1665
        %v1672 = vmul.f32 %v1550, %v1665
        %v1673 = vmul.f32 %v1552, %v1665
        %v1674 = vmul.f32 %v1554, %v1665
        %v1675 = vmul.f32 %v1556, %v1665
        %v1676 = vmul.f32 %v1558, %v1665
        %v1677 = vmul.f32 %v1560, %v1665
        %v1678 = vmul.f32 %v1562, %v1665
        %v1679 = vmul.f32 %v1564, %v1665
        %v1680 = vmul.f32 %v1566, %v1665
        %v1681 = vmul.f32 %v1568, %v1665
        %v1682 = vmul.f32 %v1570, %v1665
        %v1683 = vmul.f32 %v1572, %v1665
        %v1684 = vmul.f32 %v1574, %v1665
        %v1685 = vmul.f32 %v1576, %v1665
        %v1686 = vmul.f32 %v1578, %v1665
        %v1687 = vmul.f32 %v1580, %v1665
        %v1688 = vmul.f32 %v1582, %v1665
        %v1689 = vmul.f32 %v1584, %v1665
        %v1690 = vmul.f32 %v1586, %v1665
        %v1691 = vmul.f32 %v1588, %v1665
        %v1692 = vmul.f32 %v1590, %v1665
        %v1693 = vmul.f32 %v1592, %v1665
        %v1694 = vmul.f32 %v1594, %v1665
        %v1695 = vmul.f32 %v1596, %v1665
        %v1696 = vmul.f32 %v1598, %v1665
        %v1697 = vmul.f32 %v1600, %v1665
        %v1698 = vmul.f32 %v1602, %v1665
        %v1699 = vmul.f32 %v1604, %v1665
        %v1700 = vmul.f32 %v1606, %v1665
        %v1701 = vmul.f32 %v1608, %v1665
        %v1702 = vmul.f32 %v1610, %v1665
        %v1703 = vmul.f32 %v1612, %v1665
        %v1704 = vmul.f32 %v1614, %v1665
        %v1705 = vmul.f32 %v1616, %v1665
        %v1706 = vmul.f32 %v1618, %v1665
        %v1707 = vmul.f32 %v1620, %v1665
        %v1708 = vmul.f32 %v1622, %v1665
        %v1709 = vmul.f32 %v1624, %v1665
        %v1710 = vmul.f32 %v1626, %v1665
        %v1711 = vmul.f32 %v1628, %v1665
        %v1712 = vmul.f32 %v1630, %v1665
        %v1713 = vmul.f32 %v1632, %v1665
        %v1714 = vmul.f32 %v1634, %v1665
        %v1715 = vmul.f32 %v1636, %v1665
        %v1716 = vmul.f32 %v1638, %v1665
        %v1717 = vmul.f32 %v1640, %v1665
        %v1718 = vmul.f32 %v1642, %v1665
        %v1719 = vmul.f32 %v1644, %v1665
        %v1720 = vmul.f32 %v1646, %v1665
        %v1721 = vmul.f32 %v1648, %v1665
        %v1722 = vmul.f32 %v1650, %v1665
        %v1723 = vmul.f32 %v1652, %v1665
        %v1724 = vmul.f32 %v1654, %v1665
        %v1725 = vmul.f32 %v1656, %v1665
        %v1726 = vmul.f32 %v1658, %v1665
        %v1727 = vmul.f32 %v1660, %v1665
        %v1728 = vmul.f32 %v1662, %v1665
        %v1729 = vmul.f32 %v1664, %v1665
        %v1730 = vsub.f32 %v1473, %v1666
        %v1731 = vsub.f32 %v1474, %v1667
        %v1732 = vsub.f32 %v1475, %v1668
        %v1733 = vsub.f32 %v1476, %v1669
        %v1734 = vsub.f32 %v1477, %v1670
        %v1735 = vsub.f32 %v1478, %v1671
        %v1736 = vsub.f32 %v1479, %v1672
        %v1737 = vsub.f32 %v1480, %v1673
        %v1738 = vsub.f32 %v1481, %v1674
        %v1739 = vsub.f32 %v1482, %v1675
        %v1740 = vsub.f32 %v1483, %v1676
        %v1741 = vsub.f32 %v1484, %v1677
        %v1742 = vsub.f32 %v1485, %v1678
        %v1743 = vsub.f32 %v1486, %v1679
        %v1744 = vsub.f32 %v1487, %v1680
        %v1745 = vsub.f32 %v1488, %v1681
        %v1746 = vsub.f32 %v1489, %v1682
        %v1747 = vsub.f32 %v1490, %v1683
        %v1748 = vsub.f32 %v1491, %v1684
        %v1749 = vsub.f32 %v1492, %v1685
        %v1750 = vsub.f32 %v1493, %v1686
        %v1751 = vsub.f32 %v1494, %v1687
        %v1752 = vsub.f32 %v1495, %v1688
        %v1753 = vsub.f32 %v1496, %v1689
        %v1754 = vsub.f32 %v1497, %v1690
        %v1755 = vsub.f32 %v1498, %v1691
        %v1756 = vsub.f32 %v1499, %v1692
        %v1757 = vsub.f32 %v1500, %v1693
        %v1758 = vsub.f32 %v1501, %v1694
        %v1759 = vsub.f32 %v1502, %v1695
        %v1760 = vsub.f32 %v1503, %v1696
        %v1761 = vsub.f32 %v1504, %v1697
        %v1762 = vsub.f32 %v1505, %v1698
        %v1763 = vsub.f32 %v1506, %v1699
        %v1764 = vsub.f32 %v1507, %v1700
        %v1765 = vsub.f32 %v1508, %v1701
        %v1766 = vsub.f32 %v1509, %v1702
        %v1767 = vsub.f32 %v1510, %v1703
        %v1768 = vsub.f32 %v1511, %v1704
        %v1769 = vsub.f32 %v1512, %v1705
        %v1770 = vsub.f32 %v1513, %v1706
        %v1771 = vsub.f32 %v1514, %v1707
        %v1772 = vsub.f32 %v1515, %v1708
        %v1773 = vsub.f32 %v1516, %v1709
        %v1774 = vsub.f32 %v1517, %v1710
        %v1775 = vsub.f32 %v1518, %v1711
        %v1776 = vsub.f32 %v1519, %v1712
        %v1777 = vsub.f32 %v1520, %v1713
        %v1778 = vsub.f32 %v1521, %v1714
        %v1779 = vsub.f32 %v1522, %v1715
        %v1780 = vsub.f32 %v1523, %v1716
        %v1781 = vsub.f32 %v1524, %v1717
        %v1782 = vsub.f32 %v1525, %v1718
        %v1783 = vsub.f32 %v1526, %v1719
        %v1784 = vsub.f32 %v1527, %v1720
        %v1785 = vsub.f32 %v1528, %v1721
        %v1786 = vsub.f32 %v1529, %v1722
        %v1787 = vsub.f32 %v1530, %v1723
        %v1788 = vsub.f32 %v1531, %v1724
        %v1789 = vsub.f32 %v1532, %v1725
        %v1790 = vsub.f32 %v1533, %v1726
        %v1791 = vsub.f32 %v1534, %v1727
        %v1792 = vsub.f32 %v1535, %v1728
        %v1793 = vsub.f32 %v1536, %v1729
        %v1794 = vmul.f32 %v1730, %v1730
        %v1795 = vmul.f32 %v1731, %v1731
        %v1796 = vmul.f32 %v1732, %v1732
        %v1797 = vmul.f32 %v1733, %v1733
        %v1798 = vmul.f32 %v1734, %v1734
        %v1799 = vmul.f32 %v1735, %v1735
        %v1800 = vmul.f32 %v1736, %v1736
        %v1801 = vmul.f32 %v1737, %v1737
        %v1802 = vmul.f32 %v1738, %v1738
        %v1803 = vmul.f32 %v1739, %v1739
        %v1804 = vmul.f32 %v1740, %v1740
        %v1805 = vmul.f32 %v1741, %v1741
        %v1806 = vmul.f32 %v1742, %v1742
        %v1807 = vmul.f32 %v1743, %v1743
        %v1808 = vmul.f32 %v1744, %v1744
        %v1809 = vmul.f32 %v1745, %v1745
        %v1810 = vmul.f32 %v1746, %v1746
        %v1811 = vmul.f32 %v1747, %v1747
        %v1812 = vmul.f32 %v1748, %v1748
        %v1813 = vmul.f32 %v1749, %v1749
        %v1814 = vmul.f32 %v1750, %v1750
        %v1815 = vmul.f32 %v1751, %v1751
        %v1816 = vmul.f32 %v1752, %v1752
        %v1817 = vmul.f32 %v1753, %v1753
        %v1818 = vmul.f32 %v1754, %v1754
        %v1819 = vmul.f32 %v1755, %v1755
        %v1820 = vmul.f32 %v1756, %v1756
        %v1821 = vmul.f32 %v1757, %v1757
        %v1822 = vmul.f32 %v1758, %v1758
        %v1823 = vmul.f32 %v1759, %v1759
        %v1824 = vmul.f32 %v1760, %v1760
        %v1825 = vmul.f32 %v1761, %v1761
        %v1826 = vmul.f32 %v1762, %v1762
        %v1827 = vmul.f32 %v1763, %v1763
        %v1828 = vmul.f32 %v1764, %v1764
        %v1829 = vmul.f32 %v1765, %v1765
        %v1830 = vmul.f32 %v1766, %v1766
        %v1831 = vmul.f32 %v1767, %v1767
        %v1832 = vmul.f32 %v1768, %v1768
        %v1833 = vmul.f32 %v1769, %v1769
        %v1834 = vmul.f32 %v1770, %v1770
        %v1835 = vmul.f32 %v1771, %v1771
        %v1836 = vmul.f32 %v1772, %v1772
        %v1837 = vmul.f32 %v1773, %v1773
        %v1838 = vmul.f32 %v1774, %v1774
        %v1839 = vmul.f32 %v1775, %v1775
        %v1840 = vmul.f32 %v1776, %v1776
        %v1841 = vmul.f32 %v1777, %v1777
        %v1842 = vmul.f32 %v1778, %v1778
        %v1843 = vmul.f32 %v1779, %v1779
        %v1844 = vmul.f32 %v1780, %v1780
        %v1845 = vmul.f32 %v1781, %v1781
        %v1846 = vmul.f32 %v1782, %v1782
        %v1847 = vmul.f32 %v1783, %v1783
        %v1848 = vmul.f32 %v1784, %v1784
        %v1849 = vmul.f32 %v1785, %v1785
        %v1850 = vmul.f32 %v1786, %v1786
        %v1851 = vmul.f32 %v1787, %v1787
        %v1852 = vmul.f32 %v1788, %v1788
        %v1853 = vmul.f32 %v1789, %v1789
        %v1854 = vmul.f32 %v1790, %v1790
        %v1855 = vmul.f32 %v1791, %v1791
        %v1856 = vmul.f32 %v1792, %v1792
        %v1857 = vmul.f32 %v1793, %v1793
        %1858 = vadd.xlane.f32.xlu0 %v1794
        %v1859 = vpop.xlane.xlu0 %1858
        %1860 = vadd.xlane.f32.xlu0 %v1795
        %v1861 = vpop.xlane.xlu0 %1860
        %1862 = vadd.xlane.f32.xlu0 %v1796
        %v1863 = vpop.xlane.xlu0 %1862
        %1864 = vadd.xlane.f32.xlu0 %v1797
        %v1865 = vpop.xlane.xlu0 %1864
        %1866 = vadd.xlane.f32.xlu0 %v1798
        %v1867 = vpop.xlane.xlu0 %1866
        %1868 = vadd.xlane.f32.xlu0 %v1799
        %v1869 = vpop.xlane.xlu0 %1868
        %1870 = vadd.xlane.f32.xlu0 %v1800
        %v1871 = vpop.xlane.xlu0 %1870
        %1872 = vadd.xlane.f32.xlu0 %v1801
        %v1873 = vpop.xlane.xlu0 %1872
        %1874 = vadd.xlane.f32.xlu0 %v1802
        %v1875 = vpop.xlane.xlu0 %1874
        %1876 = vadd.xlane.f32.xlu0 %v1803
        %v1877 = vpop.xlane.xlu0 %1876
        %1878 = vadd.xlane.f32.xlu0 %v1804
        %v1879 = vpop.xlane.xlu0 %1878
        %1880 = vadd.xlane.f32.xlu0 %v1805
        %v1881 = vpop.xlane.xlu0 %1880
        %1882 = vadd.xlane.f32.xlu0 %v1806
        %v1883 = vpop.xlane.xlu0 %1882
        %1884 = vadd.xlane.f32.xlu0 %v1807
        %v1885 = vpop.xlane.xlu0 %1884
        %1886 = vadd.xlane.f32.xlu0 %v1808
        %v1887 = vpop.xlane.xlu0 %1886
        %1888 = vadd.xlane.f32.xlu0 %v1809
        %v1889 = vpop.xlane.xlu0 %1888
        %1890 = vadd.xlane.f32.xlu0 %v1810
        %v1891 = vpop.xlane.xlu0 %1890
        %1892 = vadd.xlane.f32.xlu0 %v1811
        %v1893 = vpop.xlane.xlu0 %1892
        %1894 = vadd.xlane.f32.xlu0 %v1812
        %v1895 = vpop.xlane.xlu0 %1894
        %1896 = vadd.xlane.f32.xlu0 %v1813
        %v1897 = vpop.xlane.xlu0 %1896
        %1898 = vadd.xlane.f32.xlu0 %v1814
        %v1899 = vpop.xlane.xlu0 %1898
        %1900 = vadd.xlane.f32.xlu0 %v1815
        %v1901 = vpop.xlane.xlu0 %1900
        %1902 = vadd.xlane.f32.xlu0 %v1816
        %v1903 = vpop.xlane.xlu0 %1902
        %1904 = vadd.xlane.f32.xlu0 %v1817
        %v1905 = vpop.xlane.xlu0 %1904
        %1906 = vadd.xlane.f32.xlu0 %v1818
        %v1907 = vpop.xlane.xlu0 %1906
        %1908 = vadd.xlane.f32.xlu0 %v1819
        %v1909 = vpop.xlane.xlu0 %1908
        %1910 = vadd.xlane.f32.xlu0 %v1820
        %v1911 = vpop.xlane.xlu0 %1910
        %1912 = vadd.xlane.f32.xlu0 %v1821
        %v1913 = vpop.xlane.xlu0 %1912
        %1914 = vadd.xlane.f32.xlu0 %v1822
        %v1915 = vpop.xlane.xlu0 %1914
        %1916 = vadd.xlane.f32.xlu0 %v1823
        %v1917 = vpop.xlane.xlu0 %1916
        %1918 = vadd.xlane.f32.xlu0 %v1824
        %v1919 = vpop.xlane.xlu0 %1918
        %1920 = vadd.xlane.f32.xlu0 %v1825
        %v1921 = vpop.xlane.xlu0 %1920
        %1922 = vadd.xlane.f32.xlu0 %v1826
        %v1923 = vpop.xlane.xlu0 %1922
        %1924 = vadd.xlane.f32.xlu0 %v1827
        %v1925 = vpop.xlane.xlu0 %1924
        %1926 = vadd.xlane.f32.xlu0 %v1828
        %v1927 = vpop.xlane.xlu0 %1926
        %1928 = vadd.xlane.f32.xlu0 %v1829
        %v1929 = vpop.xlane.xlu0 %1928
        %1930 = vadd.xlane.f32.xlu0 %v1830
        %v1931 = vpop.xlane.xlu0 %1930
        %1932 = vadd.xlane.f32.xlu0 %v1831
        %v1933 = vpop.xlane.xlu0 %1932
        %1934 = vadd.xlane.f32.xlu0 %v1832
        %v1935 = vpop.xlane.xlu0 %1934
        %1936 = vadd.xlane.f32.xlu0 %v1833
        %v1937 = vpop.xlane.xlu0 %1936
        %1938 = vadd.xlane.f32.xlu0 %v1834
        %v1939 = vpop.xlane.xlu0 %1938
        %1940 = vadd.xlane.f32.xlu0 %v1835
        %v1941 = vpop.xlane.xlu0 %1940
        %1942 = vadd.xlane.f32.xlu0 %v1836
        %v1943 = vpop.xlane.xlu0 %1942
        %1944 = vadd.xlane.f32.xlu0 %v1837
        %v1945 = vpop.xlane.xlu0 %1944
        %1946 = vadd.xlane.f32.xlu0 %v1838
        %v1947 = vpop.xlane.xlu0 %1946
        %1948 = vadd.xlane.f32.xlu0 %v1839
        %v1949 = vpop.xlane.xlu0 %1948
        %1950 = vadd.xlane.f32.xlu0 %v1840
        %v1951 = vpop.xlane.xlu0 %1950
        %1952 = vadd.xlane.f32.xlu0 %v1841
        %v1953 = vpop.xlane.xlu0 %1952
        %1954 = vadd.xlane.f32.xlu0 %v1842
        %v1955 = vpop.xlane.xlu0 %1954
        %1956 = vadd.xlane.f32.xlu0 %v1843
        %v1957 = vpop.xlane.xlu0 %1956
        %1958 = vadd.xlane.f32.xlu0 %v1844
        %v1959 = vpop.xlane.xlu0 %1958
        %1960 = vadd.xlane.f32.xlu0 %v1845
        %v1961 = vpop.xlane.xlu0 %1960
        %1962 = vadd.xlane.f32.xlu0 %v1846
        %v1963 = vpop.xlane.xlu0 %1962
        %1964 = vadd.xlane.f32.xlu0 %v1847
        %v1965 = vpop.xlane.xlu0 %1964
        %1966 = vadd.xlane.f32.xlu0 %v1848
        %v1967 = vpop.xlane.xlu0 %1966
        %1968 = vadd.xlane.f32.xlu0 %v1849
        %v1969 = vpop.xlane.xlu0 %1968
        %1970 = vadd.xlane.f32.xlu0 %v1850
        %v1971 = vpop.xlane.xlu0 %1970
        %1972 = vadd.xlane.f32.xlu0 %v1851
        %v1973 = vpop.xlane.xlu0 %1972
        %1974 = vadd.xlane.f32.xlu0 %v1852
        %v1975 = vpop.xlane.xlu0 %1974
        %1976 = vadd.xlane.f32.xlu0 %v1853
        %v1977 = vpop.xlane.xlu0 %1976
        %1978 = vadd.xlane.f32.xlu0 %v1854
        %v1979 = vpop.xlane.xlu0 %1978
        %1980 = vadd.xlane.f32.xlu0 %v1855
        %v1981 = vpop.xlane.xlu0 %1980
        %1982 = vadd.xlane.f32.xlu0 %v1856
        %v1983 = vpop.xlane.xlu0 %1982
        %1984 = vadd.xlane.f32.xlu0 %v1857
        %v1985 = vpop.xlane.xlu0 %1984
        %v1986 = vmul.f32 %v1859, %v1665
        %v1987 = vmul.f32 %v1861, %v1665
        %v1988 = vmul.f32 %v1863, %v1665
        %v1989 = vmul.f32 %v1865, %v1665
        %v1990 = vmul.f32 %v1867, %v1665
        %v1991 = vmul.f32 %v1869, %v1665
        %v1992 = vmul.f32 %v1871, %v1665
        %v1993 = vmul.f32 %v1873, %v1665
        %v1994 = vmul.f32 %v1875, %v1665
        %v1995 = vmul.f32 %v1877, %v1665
        %v1996 = vmul.f32 %v1879, %v1665
        %v1997 = vmul.f32 %v1881, %v1665
        %v1998 = vmul.f32 %v1883, %v1665
        %v1999 = vmul.f32 %v1885, %v1665
        %v2000 = vmul.f32 %v1887, %v1665
        %v2001 = vmul.f32 %v1889, %v1665
        %v2002 = vmul.f32 %v1891, %v1665
        %v2003 = vmul.f32 %v1893, %v1665
        %v2004 = vmul.f32 %v1895, %v1665
        %v2005 = vmul.f32 %v1897, %v1665
        %v2006 = vmul.f32 %v1899, %v1665
        %v2007 = vmul.f32 %v1901, %v1665
        %v2008 = vmul.f32 %v1903, %v1665
        %v2009 = vmul.f32 %v1905, %v1665
        %v2010 = vmul.f32 %v1907, %v1665
        %v2011 = vmul.f32 %v1909, %v1665
        %v2012 = vmul.f32 %v1911, %v1665
        %v2013 = vmul.f32 %v1913, %v1665
        %v2014 = vmul.f32 %v1915, %v1665
        %v2015 = vmul.f32 %v1917, %v1665
        %v2016 = vmul.f32 %v1919, %v1665
        %v2017 = vmul.f32 %v1921, %v1665
        %v2018 = vmul.f32 %v1923, %v1665
        %v2019 = vmul.f32 %v1925, %v1665
        %v2020 = vmul.f32 %v1927, %v1665
        %v2021 = vmul.f32 %v1929, %v1665
        %v2022 = vmul.f32 %v1931, %v1665
        %v2023 = vmul.f32 %v1933, %v1665
        %v2024 = vmul.f32 %v1935, %v1665
        %v2025 = vmul.f32 %v1937, %v1665
        %v2026 = vmul.f32 %v1939, %v1665
        %v2027 = vmul.f32 %v1941, %v1665
        %v2028 = vmul.f32 %v1943, %v1665
        %v2029 = vmul.f32 %v1945, %v1665
        %v2030 = vmul.f32 %v1947, %v1665
        %v2031 = vmul.f32 %v1949, %v1665
        %v2032 = vmul.f32 %v1951, %v1665
        %v2033 = vmul.f32 %v1953, %v1665
        %v2034 = vmul.f32 %v1955, %v1665
        %v2035 = vmul.f32 %v1957, %v1665
        %v2036 = vmul.f32 %v1959, %v1665
        %v2037 = vmul.f32 %v1961, %v1665
        %v2038 = vmul.f32 %v1963, %v1665
        %v2039 = vmul.f32 %v1965, %v1665
        %v2040 = vmul.f32 %v1967, %v1665
        %v2041 = vmul.f32 %v1969, %v1665
        %v2042 = vmul.f32 %v1971, %v1665
        %v2043 = vmul.f32 %v1973, %v1665
        %v2044 = vmul.f32 %v1975, %v1665
        %v2045 = vmul.f32 %v1977, %v1665
        %v2046 = vmul.f32 %v1979, %v1665
        %v2047 = vmul.f32 %v1981, %v1665
        %v2048 = vmul.f32 %v1983, %v1665
        %v2049 = vmul.f32 %v1985, %v1665
        %v2050 = vadd.f32 %v1986, 1e-05
        %v2051 = vadd.f32 %v1987, 1e-05
        %v2052 = vadd.f32 %v1988, 1e-05
        %v2053 = vadd.f32 %v1989, 1e-05
        %v2054 = vadd.f32 %v1990, 1e-05
        %v2055 = vadd.f32 %v1991, 1e-05
        %v2056 = vadd.f32 %v1992, 1e-05
        %v2057 = vadd.f32 %v1993, 1e-05
        %v2058 = vadd.f32 %v1994, 1e-05
        %v2059 = vadd.f32 %v1995, 1e-05
        %v2060 = vadd.f32 %v1996, 1e-05
        %v2061 = vadd.f32 %v1997, 1e-05
        %v2062 = vadd.f32 %v1998, 1e-05
        %v2063 = vadd.f32 %v1999, 1e-05
        %v2064 = vadd.f32 %v2000, 1e-05
        %v2065 = vadd.f32 %v2001, 1e-05
        %v2066 = vadd.f32 %v2002, 1e-05
        %v2067 = vadd.f32 %v2003, 1e-05
        %v2068 = vadd.f32 %v2004, 1e-05
        %v2069 = vadd.f32 %v2005, 1e-05
        %v2070 = vadd.f32 %v2006, 1e-05
        %v2071 = vadd.f32 %v2007, 1e-05
        %v2072 = vadd.f32 %v2008, 1e-05
        %v2073 = vadd.f32 %v2009, 1e-05
        %v2074 = vadd.f32 %v2010, 1e-05
        %v2075 = vadd.f32 %v2011, 1e-05
        %v2076 = vadd.f32 %v2012, 1e-05
        %v2077 = vadd.f32 %v2013, 1e-05
        %v2078 = vadd.f32 %v2014, 1e-05
        %v2079 = vadd.f32 %v2015, 1e-05
        %v2080 = vadd.f32 %v2016, 1e-05
        %v2081 = vadd.f32 %v2017, 1e-05
        %v2082 = vadd.f32 %v2018, 1e-05
        %v2083 = vadd.f32 %v2019, 1e-05
        %v2084 = vadd.f32 %v2020, 1e-05
        %v2085 = vadd.f32 %v2021, 1e-05
        %v2086 = vadd.f32 %v2022, 1e-05
        %v2087 = vadd.f32 %v2023, 1e-05
        %v2088 = vadd.f32 %v2024, 1e-05
        %v2089 = vadd.f32 %v2025, 1e-05
        %v2090 = vadd.f32 %v2026, 1e-05
        %v2091 = vadd.f32 %v2027, 1e-05
        %v2092 = vadd.f32 %v2028, 1e-05
        %v2093 = vadd.f32 %v2029, 1e-05
        %v2094 = vadd.f32 %v2030, 1e-05
        %v2095 = vadd.f32 %v2031, 1e-05
        %v2096 = vadd.f32 %v2032, 1e-05
        %v2097 = vadd.f32 %v2033, 1e-05
        %v2098 = vadd.f32 %v2034, 1e-05
        %v2099 = vadd.f32 %v2035, 1e-05
        %v2100 = vadd.f32 %v2036, 1e-05
        %v2101 = vadd.f32 %v2037, 1e-05
        %v2102 = vadd.f32 %v2038, 1e-05
        %v2103 = vadd.f32 %v2039, 1e-05
        %v2104 = vadd.f32 %v2040, 1e-05
        %v2105 = vadd.f32 %v2041, 1e-05
        %v2106 = vadd.f32 %v2042, 1e-05
        %v2107 = vadd.f32 %v2043, 1e-05
        %v2108 = vadd.f32 %v2044, 1e-05
        %v2109 = vadd.f32 %v2045, 1e-05
        %v2110 = vadd.f32 %v2046, 1e-05
        %v2111 = vadd.f32 %v2047, 1e-05
        %v2112 = vadd.f32 %v2048, 1e-05
        %v2113 = vadd.f32 %v2049, 1e-05
        %v2114 = vrsqrt.pop %v2050
        %v2115 = vrsqrt.pop %v2051
        %v2116 = vrsqrt.pop %v2052
        %v2117 = vrsqrt.pop %v2053
        %v2118 = vrsqrt.pop %v2054
        %v2119 = vrsqrt.pop %v2055
        %v2120 = vrsqrt.pop %v2056
        %v2121 = vrsqrt.pop %v2057
        %v2122 = vrsqrt.pop %v2058
        %v2123 = vrsqrt.pop %v2059
        %v2124 = vrsqrt.pop %v2060
        %v2125 = vrsqrt.pop %v2061
        %v2126 = vrsqrt.pop %v2062
        %v2127 = vrsqrt.pop %v2063
        %v2128 = vrsqrt.pop %v2064
        %v2129 = vrsqrt.pop %v2065
        %v2130 = vrsqrt.pop %v2066
        %v2131 = vrsqrt.pop %v2067
        %v2132 = vrsqrt.pop %v2068
        %v2133 = vrsqrt.pop %v2069
        %v2134 = vrsqrt.pop %v2070
        %v2135 = vrsqrt.pop %v2071
        %v2136 = vrsqrt.pop %v2072
        %v2137 = vrsqrt.pop %v2073
        %v2138 = vrsqrt.pop %v2074
        %v2139 = vrsqrt.pop %v2075
        %v2140 = vrsqrt.pop %v2076
        %v2141 = vrsqrt.pop %v2077
        %v2142 = vrsqrt.pop %v2078
        %v2143 = vrsqrt.pop %v2079
        %v2144 = vrsqrt.pop %v2080
        %v2145 = vrsqrt.pop %v2081
        %v2146 = vrsqrt.pop %v2082
        %v2147 = vrsqrt.pop %v2083
        %v2148 = vrsqrt.pop %v2084
        %v2149 = vrsqrt.pop %v2085
        %v2150 = vrsqrt.pop %v2086
        %v2151 = vrsqrt.pop %v2087
        %v2152 = vrsqrt.pop %v2088
        %v2153 = vrsqrt.pop %v2089
        %v2154 = vrsqrt.pop %v2090
        %v2155 = vrsqrt.pop %v2091
        %v2156 = vrsqrt.pop %v2092
        %v2157 = vrsqrt.pop %v2093
        %v2158 = vrsqrt.pop %v2094
        %v2159 = vrsqrt.pop %v2095
        %v2160 = vrsqrt.pop %v2096
        %v2161 = vrsqrt.pop %v2097
        %v2162 = vrsqrt.pop %v2098
        %v2163 = vrsqrt.pop %v2099
        %v2164 = vrsqrt.pop %v2100
        %v2165 = vrsqrt.pop %v2101
        %v2166 = vrsqrt.pop %v2102
        %v2167 = vrsqrt.pop %v2103
        %v2168 = vrsqrt.pop %v2104
        %v2169 = vrsqrt.pop %v2105
        %v2170 = vrsqrt.pop %v2106
        %v2171 = vrsqrt.pop %v2107
        %v2172 = vrsqrt.pop %v2108
        %v2173 = vrsqrt.pop %v2109
        %v2174 = vrsqrt.pop %v2110
        %v2175 = vrsqrt.pop %v2111
        %v2176 = vrsqrt.pop %v2112
        %v2177 = vrsqrt.pop %v2113
        %v2178 = vmul.f32 %v1730, %v2114
        %v2179 = vmul.f32 %v1731, %v2115
        %v2180 = vmul.f32 %v1732, %v2116
        %v2181 = vmul.f32 %v1733, %v2117
        %v2182 = vmul.f32 %v1734, %v2118
        %v2183 = vmul.f32 %v1735, %v2119
        %v2184 = vmul.f32 %v1736, %v2120
        %v2185 = vmul.f32 %v1737, %v2121
        %v2186 = vmul.f32 %v1738, %v2122
        %v2187 = vmul.f32 %v1739, %v2123
        %v2188 = vmul.f32 %v1740, %v2124
        %v2189 = vmul.f32 %v1741, %v2125
        %v2190 = vmul.f32 %v1742, %v2126
        %v2191 = vmul.f32 %v1743, %v2127
        %v2192 = vmul.f32 %v1744, %v2128
        %v2193 = vmul.f32 %v1745, %v2129
        %v2194 = vmul.f32 %v1746, %v2130
        %v2195 = vmul.f32 %v1747, %v2131
        %v2196 = vmul.f32 %v1748, %v2132
        %v2197 = vmul.f32 %v1749, %v2133
        %v2198 = vmul.f32 %v1750, %v2134
        %v2199 = vmul.f32 %v1751, %v2135
        %v2200 = vmul.f32 %v1752, %v2136
        %v2201 = vmul.f32 %v1753, %v2137
        %v2202 = vmul.f32 %v1754, %v2138
        %v2203 = vmul.f32 %v1755, %v2139
        %v2204 = vmul.f32 %v1756, %v2140
        %v2205 = vmul.f32 %v1757, %v2141
        %v2206 = vmul.f32 %v1758, %v2142
        %v2207 = vmul.f32 %v1759, %v2143
        %v2208 = vmul.f32 %v1760, %v2144
        %v2209 = vmul.f32 %v1761, %v2145
        %v2210 = vmul.f32 %v1762, %v2146
        %v2211 = vmul.f32 %v1763, %v2147
        %v2212 = vmul.f32 %v1764, %v2148
        %v2213 = vmul.f32 %v1765, %v2149
        %v2214 = vmul.f32 %v1766, %v2150
        %v2215 = vmul.f32 %v1767, %v2151
        %v2216 = vmul.f32 %v1768, %v2152
        %v2217 = vmul.f32 %v1769, %v2153
        %v2218 = vmul.f32 %v1770, %v2154
        %v2219 = vmul.f32 %v1771, %v2155
        %v2220 = vmul.f32 %v1772, %v2156
        %v2221 = vmul.f32 %v1773, %v2157
        %v2222 = vmul.f32 %v1774, %v2158
        %v2223 = vmul.f32 %v1775, %v2159
        %v2224 = vmul.f32 %v1776, %v2160
        %v2225 = vmul.f32 %v1777, %v2161
        %v2226 = vmul.f32 %v1778, %v2162
        %v2227 = vmul.f32 %v1779, %v2163
        %v2228 = vmul.f32 %v1780, %v2164
        %v2229 = vmul.f32 %v1781, %v2165
        %v2230 = vmul.f32 %v1782, %v2166
        %v2231 = vmul.f32 %v1783, %v2167
        %v2232 = vmul.f32 %v1784, %v2168
        %v2233 = vmul.f32 %v1785, %v2169
        %v2234 = vmul.f32 %v1786, %v2170
        %v2235 = vmul.f32 %v1787, %v2171
        %v2236 = vmul.f32 %v1788, %v2172
        %v2237 = vmul.f32 %v1789, %v2173
        %v2238 = vmul.f32 %v1790, %v2174
        %v2239 = vmul.f32 %v1791, %v2175
        %v2240 = vmul.f32 %v1792, %v2176
        %v2241 = vmul.f32 %v1793, %v2177
        %v2242 = vld [vmem:[%s5] sm:$0x1]
        %v2244 = vlaneseq
        %v2245 = vshrl.u32 %v2244, 7
        %v2246 = vsub.s32 0, %v2245
        %v2247 = vrot.slane %v2242, %v2246
        %v2249 = vmul.f32 %v2178, %v2247
        %v2250 = vmul.f32 %v2179, %v2247
        %v2251 = vmul.f32 %v2180, %v2247
        %v2252 = vmul.f32 %v2181, %v2247
        %v2253 = vmul.f32 %v2182, %v2247
        %v2254 = vmul.f32 %v2183, %v2247
        %v2255 = vmul.f32 %v2184, %v2247
        %v2256 = vmul.f32 %v2185, %v2247
        %v2257 = vmul.f32 %v2186, %v2247
        %v2258 = vmul.f32 %v2187, %v2247
        %v2259 = vmul.f32 %v2188, %v2247
        %v2260 = vmul.f32 %v2189, %v2247
        %v2261 = vmul.f32 %v2190, %v2247
        %v2262 = vmul.f32 %v2191, %v2247
        %v2263 = vmul.f32 %v2192, %v2247
        %v2264 = vmul.f32 %v2193, %v2247
        %v2265 = vmul.f32 %v2194, %v2247
        %v2266 = vmul.f32 %v2195, %v2247
        %v2267 = vmul.f32 %v2196, %v2247
        %v2268 = vmul.f32 %v2197, %v2247
        %v2269 = vmul.f32 %v2198, %v2247
        %v2270 = vmul.f32 %v2199, %v2247
        %v2271 = vmul.f32 %v2200, %v2247
        %v2272 = vmul.f32 %v2201, %v2247
        %v2273 = vmul.f32 %v2202, %v2247
        %v2274 = vmul.f32 %v2203, %v2247
        %v2275 = vmul.f32 %v2204, %v2247
        %v2276 = vmul.f32 %v2205, %v2247
        %v2277 = vmul.f32 %v2206, %v2247
        %v2278 = vmul.f32 %v2207, %v2247
        %v2279 = vmul.f32 %v2208, %v2247
        %v2280 = vmul.f32 %v2209, %v2247
        %v2281 = vmul.f32 %v2210, %v2247
        %v2282 = vmul.f32 %v2211, %v2247
        %v2283 = vmul.f32 %v2212, %v2247
        %v2284 = vmul.f32 %v2213, %v2247
        %v2285 = vmul.f32 %v2214, %v2247
        %v2286 = vmul.f32 %v2215, %v2247
        %v2287 = vmul.f32 %v2216, %v2247
        %v2288 = vmul.f32 %v2217, %v2247
        %v2289 = vmul.f32 %v2218, %v2247
        %v2290 = vmul.f32 %v2219, %v2247
        %v2291 = vmul.f32 %v2220, %v2247
        %v2292 = vmul.f32 %v2221, %v2247
        %v2293 = vmul.f32 %v2222, %v2247
        %v2294 = vmul.f32 %v2223, %v2247
        %v2295 = vmul.f32 %v2224, %v2247
        %v2296 = vmul.f32 %v2225, %v2247
        %v2297 = vmul.f32 %v2226, %v2247
        %v2298 = vmul.f32 %v2227, %v2247
        %v2299 = vmul.f32 %v2228, %v2247
        %v2300 = vmul.f32 %v2229, %v2247
        %v2301 = vmul.f32 %v2230, %v2247
        %v2302 = vmul.f32 %v2231, %v2247
        %v2303 = vmul.f32 %v2232, %v2247
        %v2304 = vmul.f32 %v2233, %v2247
        %v2305 = vmul.f32 %v2234, %v2247
        %v2306 = vmul.f32 %v2235, %v2247
        %v2307 = vmul.f32 %v2236, %v2247
        %v2308 = vmul.f32 %v2237, %v2247
        %v2309 = vmul.f32 %v2238, %v2247
        %v2310 = vmul.f32 %v2239, %v2247
        %v2311 = vmul.f32 %v2240, %v2247
        %v2312 = vmul.f32 %v2241, %v2247
        %v2313 = vld [vmem:[%s6] sm:$0x1]
        %v2315 = vlaneseq
        %v2316 = vshrl.u32 %v2315, 7
        %v2317 = vsub.s32 0, %v2316
        %v2318 = vrot.slane %v2313, %v2317
        %v2320 = vadd.f32 %v2249, %v2318
        %v2321 = vadd.f32 %v2250, %v2318
        %v2322 = vadd.f32 %v2251, %v2318
        %v2323 = vadd.f32 %v2252, %v2318
        %v2324 = vadd.f32 %v2253, %v2318
        %v2325 = vadd.f32 %v2254, %v2318
        %v2326 = vadd.f32 %v2255, %v2318
        %v2327 = vadd.f32 %v2256, %v2318
        %v2328 = vadd.f32 %v2257, %v2318
        %v2329 = vadd.f32 %v2258, %v2318
        %v2330 = vadd.f32 %v2259, %v2318
        %v2331 = vadd.f32 %v2260, %v2318
        %v2332 = vadd.f32 %v2261, %v2318
        %v2333 = vadd.f32 %v2262, %v2318
        %v2334 = vadd.f32 %v2263, %v2318
        %v2335 = vadd.f32 %v2264, %v2318
        %v2336 = vadd.f32 %v2265, %v2318
        %v2337 = vadd.f32 %v2266, %v2318
        %v2338 = vadd.f32 %v2267, %v2318
        %v2339 = vadd.f32 %v2268, %v2318
        %v2340 = vadd.f32 %v2269, %v2318
        %v2341 = vadd.f32 %v2270, %v2318
        %v2342 = vadd.f32 %v2271, %v2318
        %v2343 = vadd.f32 %v2272, %v2318
        %v2344 = vadd.f32 %v2273, %v2318
        %v2345 = vadd.f32 %v2274, %v2318
        %v2346 = vadd.f32 %v2275, %v2318
        %v2347 = vadd.f32 %v2276, %v2318
        %v2348 = vadd.f32 %v2277, %v2318
        %v2349 = vadd.f32 %v2278, %v2318
        %v2350 = vadd.f32 %v2279, %v2318
        %v2351 = vadd.f32 %v2280, %v2318
        %v2352 = vadd.f32 %v2281, %v2318
        %v2353 = vadd.f32 %v2282, %v2318
        %v2354 = vadd.f32 %v2283, %v2318
        %v2355 = vadd.f32 %v2284, %v2318
        %v2356 = vadd.f32 %v2285, %v2318
        %v2357 = vadd.f32 %v2286, %v2318
        %v2358 = vadd.f32 %v2287, %v2318
        %v2359 = vadd.f32 %v2288, %v2318
        %v2360 = vadd.f32 %v2289, %v2318
        %v2361 = vadd.f32 %v2290, %v2318
        %v2362 = vadd.f32 %v2291, %v2318
        %v2363 = vadd.f32 %v2292, %v2318
        %v2364 = vadd.f32 %v2293, %v2318
        %v2365 = vadd.f32 %v2294, %v2318
        %v2366 = vadd.f32 %v2295, %v2318
        %v2367 = vadd.f32 %v2296, %v2318
        %v2368 = vadd.f32 %v2297, %v2318
        %v2369 = vadd.f32 %v2298, %v2318
        %v2370 = vadd.f32 %v2299, %v2318
        %v2371 = vadd.f32 %v2300, %v2318
        %v2372 = vadd.f32 %v2301, %v2318
        %v2373 = vadd.f32 %v2302, %v2318
        %v2374 = vadd.f32 %v2303, %v2318
        %v2375 = vadd.f32 %v2304, %v2318
        %v2376 = vadd.f32 %v2305, %v2318
        %v2377 = vadd.f32 %v2306, %v2318
        %v2378 = vadd.f32 %v2307, %v2318
        %v2379 = vadd.f32 %v2308, %v2318
        %v2380 = vadd.f32 %v2309, %v2318
        %v2381 = vadd.f32 %v2310, %v2318
        %v2382 = vadd.f32 %v2311, %v2318
        %v2383 = vadd.f32 %v2312, %v2318
        %2384 = vst [vmem:[%s296] sm:$0xff] %v2320
        %2385 = vst [vmem:[%s296 + $0x8] sm:$0xff] %v2321
        %2386 = vst [vmem:[%s296 + $0x10] sm:$0xff] %v2322
        %2387 = vst [vmem:[%s296 + $0x18] sm:$0xff] %v2323
        %2388 = vst [vmem:[%s296 + $0x20] sm:$0xff] %v2324
        %2389 = vst [vmem:[%s296 + $0x28] sm:$0xff] %v2325
        %2390 = vst [vmem:[%s296 + $0x30] sm:$0xff] %v2326
        %2391 = vst [vmem:[%s296 + $0x38] sm:$0xff] %v2327
        %2392 = vst [vmem:[%s296 + $0x40] sm:$0xff] %v2328
        %2393 = vst [vmem:[%s296 + $0x48] sm:$0xff] %v2329
        %2394 = vst [vmem:[%s296 + $0x50] sm:$0xff] %v2330
        %2395 = vst [vmem:[%s296 + $0x58] sm:$0xff] %v2331
        %2396 = vst [vmem:[%s296 + $0x60] sm:$0xff] %v2332
        %2397 = vst [vmem:[%s296 + $0x68] sm:$0xff] %v2333
        %2398 = vst [vmem:[%s296 + $0x70] sm:$0xff] %v2334
        %2399 = vst [vmem:[%s296 + $0x78] sm:$0xff] %v2335
        %2400 = vst [vmem:[%s296 + $0x80] sm:$0xff] %v2336
        %2401 = vst [vmem:[%s296 + $0x88] sm:$0xff] %v2337
        %2402 = vst [vmem:[%s296 + $0x90] sm:$0xff] %v2338
        %2403 = vst [vmem:[%s296 + $0x98] sm:$0xff] %v2339
        %2404 = vst [vmem:[%s296 + $0xa0] sm:$0xff] %v2340
        %2405 = vst [vmem:[%s296 + $0xa8] sm:$0xff] %v2341
        %2406 = vst [vmem:[%s296 + $0xb0] sm:$0xff] %v2342
        %2407 = vst [vmem:[%s296 + $0xb8] sm:$0xff] %v2343
        %2408 = vst [vmem:[%s296 + $0xc0] sm:$0xff] %v2344
        %2409 = vst [vmem:[%s296 + $0xc8] sm:$0xff] %v2345
        %2410 = vst [vmem:[%s296 + $0xd0] sm:$0xff] %v2346
        %2411 = vst [vmem:[%s296 + $0xd8] sm:$0xff] %v2347
        %2412 = vst [vmem:[%s296 + $0xe0] sm:$0xff] %v2348
        %2413 = vst [vmem:[%s296 + $0xe8] sm:$0xff] %v2349
        %2414 = vst [vmem:[%s296 + $0xf0] sm:$0xff] %v2350
        %2415 = vst [vmem:[%s296 + $0xf8] sm:$0xff] %v2351
        %2416 = vst [vmem:[%s296 + $0x100] sm:$0xff] %v2352
        %2417 = vst [vmem:[%s296 + $0x108] sm:$0xff] %v2353
        %2418 = vst [vmem:[%s296 + $0x110] sm:$0xff] %v2354
        %2419 = vst [vmem:[%s296 + $0x118] sm:$0xff] %v2355
        %2420 = vst [vmem:[%s296 + $0x120] sm:$0xff] %v2356
        %2421 = vst [vmem:[%s296 + $0x128] sm:$0xff] %v2357
        %2422 = vst [vmem:[%s296 + $0x130] sm:$0xff] %v2358
        %2423 = vst [vmem:[%s296 + $0x138] sm:$0xff] %v2359
        %2424 = vst [vmem:[%s296 + $0x140] sm:$0xff] %v2360
        %2425 = vst [vmem:[%s296 + $0x148] sm:$0xff] %v2361
        %2426 = vst [vmem:[%s296 + $0x150] sm:$0xff] %v2362
        %2427 = vst [vmem:[%s296 + $0x158] sm:$0xff] %v2363
        %2428 = vst [vmem:[%s296 + $0x160] sm:$0xff] %v2364
        %2429 = vst [vmem:[%s296 + $0x168] sm:$0xff] %v2365
        %2430 = vst [vmem:[%s296 + $0x170] sm:$0xff] %v2366
        %2431 = vst [vmem:[%s296 + $0x178] sm:$0xff] %v2367
        %2432 = vst [vmem:[%s296 + $0x180] sm:$0xff] %v2368
        %2433 = vst [vmem:[%s296 + $0x188] sm:$0xff] %v2369
        %2434 = vst [vmem:[%s296 + $0x190] sm:$0xff] %v2370
        %2435 = vst [vmem:[%s296 + $0x198] sm:$0xff] %v2371
        %2436 = vst [vmem:[%s296 + $0x1a0] sm:$0xff] %v2372
        %2437 = vst [vmem:[%s296 + $0x1a8] sm:$0xff] %v2373
        %2438 = vst [vmem:[%s296 + $0x1b0] sm:$0xff] %v2374
        %2439 = vst [vmem:[%s296 + $0x1b8] sm:$0xff] %v2375
        %2440 = vst [vmem:[%s296 + $0x1c0] sm:$0xff] %v2376
        %2441 = vst [vmem:[%s296 + $0x1c8] sm:$0xff] %v2377
        %2442 = vst [vmem:[%s296 + $0x1d0] sm:$0xff] %v2378
        %2443 = vst [vmem:[%s296 + $0x1d8] sm:$0xff] %v2379
        %2444 = vst [vmem:[%s296 + $0x1e0] sm:$0xff] %v2380
        %2445 = vst [vmem:[%s296 + $0x1e8] sm:$0xff] %v2381
        %2446 = vst [vmem:[%s296 + $0x1f0] sm:$0xff] %v2382
        %2447 = vst [vmem:[%s296 + $0x1f8] sm:$0xff] %v2383
        %s2448 = sand.u32 %s184, 1
        %s2449 = scalar_lea.sflag [#allocation4], %s2448
        %s2450 = sand.u32 %s184, 1
        %s2451 = smul.addr %s2450, 512
        %s2452 = scalar_lea.vmem [#allocation5], %s2451
        // Predicated region
        $region53: #{ffn_forward.1} parent=47 // pred_check
          %p2453 = pneg %p194
        $region54: #{ffn_forward.1} parent=47 // pred_check_branch
          %2455 = sbr.rel (%p2453) target = $region56
        $region55: #{ffn_forward.1} parent=47 // pred_region
          %s2456 = smul.u32 64, %s24
          %s2458 = ssub.s32 8192, 8192
          %2459 = vsyncadd %s2449, %s2458
          %s2460 = smul.addr %s2456, 128
          %s2461 = scalar_lea.hbm %s7, %s2460
          %s2462 = sshll.u32 %s2452, 4
          %s2463 = int_to_ptr.vmem [resolvable:$true] %s2462
          %2468 = dma.vmem_to_hbm [thread:$0]  %s2463, 8192, %s2461, %s2449, 128, 128, 8
        $region56: #{ffn_forward.1} parent=47 // pred_fallthru
          _
      $region48: #{ffn_forward.1} parent=5 // pred_fallthru
        _
      %p2469 = scmp.le.s32.totalorder 2, %s19
      // Predicated region
      $region57: #{ffn_forward.1} parent=5 // pred_check
        %p2470 = pneg %p2469
      $region58: #{ffn_forward.1} parent=5 // pred_check_branch
        %2472 = sbr.rel (%p2470) target = $region60
      $region59: #{ffn_forward.1} parent=5 // pred_region
        %s2473 = ssub.s32 %s19, 2
        // Predicated region
        $region61: #{ffn_forward.1} parent=59 // pred_check
          %p2474 = pneg %p200
        $region62: #{ffn_forward.1} parent=59 // pred_check_branch
          %2476 = sbr.rel (%p2474) target = $region64
        $region63: #{ffn_forward.1} parent=59 // pred_region
          %s2477 = sand.u32 %s185, 1
          %s2478 = scalar_lea.sflag [#allocation4], %s2477
          %s2479 = sand.u32 %s185, 1
          %s2480 = smul.addr %s2479, 512
          %s2481 = scalar_lea.vmem [#allocation5], %s2480
          %2482 = dma.done %s2478, 8192
        $region64: #{ffn_forward.1} parent=59 // pred_fallthru
          _
      $region60: #{ffn_forward.1} parent=5 // pred_fallthru
        _
    $region6: #{ffn_forward.1} parent=1 // loop_footer
      %s23 = sadd.s32 1, %s19
    $region7: #{ffn_forward.1} parent=1 // loop_footer_branch
      %18 = sbr.rel target = $region3
    $region8: #{ffn_forward.1} parent=1 // loop_exit
      _
    %2483 = vsyncpa [#allocation3], 1
    %s2484 = scalar_lea.sflag [#allocation3], 1
    %2485 = vsyncpa %s2484, 1
    %2486 = vsyncpa [#allocation4], 1
    %s2487 = scalar_lea.sflag [#allocation4], 1
    %2488 = vsyncpa %s2487, 1

</llo_original>
